<compile_context>
chip_gen: v5e
topology: v5e:2x2
jax: 0.10.0
libtpu: 0.0.40
codegen_flags: <defaults>
</compile_context>

<pallas_src>
import functools

import numpy as np
import jax
import jax.numpy as jnp
from jax.experimental import pallas as pl
from jax.experimental.pallas import tpu as pltpu  # noqa: F401  (TPU backend)

LN_EPS = 1e-5          # PyTorch nn.LayerNorm default
NEG_INF = -1e30        # finite "minus infinity" for cross-batch masking
LANE = 128


def _round_up(x, m):
    return ((x + m - 1) // m) * m


def _layernorm(x, gamma, beta):
    mu = jnp.mean(x, axis=-1, keepdims=True)
    var = jnp.mean((x - mu) ** 2, axis=-1, keepdims=True)
    return (x - mu) * jax.lax.rsqrt(var + LN_EPS) * gamma + beta


def _slab_layout(depth, B, N):
    """Row offsets of the packed small-parameter slab (a single DMA)."""
    BN = B * N
    off = {
        "ln1_g": 0, "ln1_b": 1, "b_emb": 2, "ln2_g": 3, "ln2_b": 4, "b_last": 5,
        "ln_g": 6, "ln_b": 6 + depth, "pool": 6 + 2 * depth,
    }
    off["pos"] = off["pool"] + B
    off["abias"] = off["pos"] + BN
    off["rows"] = off["abias"] + BN
    return off


# ---------------------------------------------------------------------------
# Fused kernel: embed -> depth diffusion layers -> classifier head
# ---------------------------------------------------------------------------
def fused_forward_kernel(patch_ref, slab_ref, wemb_ref, wqkf_ref, wlast_ref,
                         out_ref, *, B, N, Pd, depth):
    Dm = wemb_ref.shape[1]
    PdP = patch_ref.shape[1]
    CP = out_ref.shape[1]
    BN = B * N
    off = _slab_layout(depth, B, N)

    # ---- patch embedding: LayerNorm(Pd) -> Linear -> LayerNorm(Dm) ----------
    # Padded lanes of `p` are zero, so the Pd-lane statistics below are exact;
    # zero-padded ln1 gamma/beta rows and zero w_emb rows neutralise padding.
    p = patch_ref[...]                                          # (BN, PdP)
    inv_pd = 1.0 / Pd
    mu = jnp.sum(p, axis=-1, keepdims=True) * inv_pd
    var = jnp.sum(p * p, axis=-1, keepdims=True) * inv_pd - mu * mu
    pn = ((p - mu) * jax.lax.rsqrt(var + LN_EPS)
          * slab_ref[off["ln1_g"]:off["ln1_g"] + 1, :PdP]
          + slab_ref[off["ln1_b"]:off["ln1_b"] + 1, :PdP])

    x = jnp.dot(pn, wemb_ref[...], preferred_element_type=jnp.float32)
    x = x + slab_ref[off["b_emb"]:off["b_emb"] + 1, :Dm]
    x = _layernorm(x,
                   slab_ref[off["ln2_g"]:off["ln2_g"] + 1, :Dm],
                   slab_ref[off["ln2_b"]:off["ln2_b"] + 1, :Dm])
    x = x + slab_ref[off["pos"]:off["pos"] + BN, :Dm]           # pre-tiled pos

    # block-diagonal (over batch) additive attention bias: 0 / -1e30
    abias = slab_ref[off["abias"]:off["abias"] + BN, :BN]       # (BN, BN)

    # ---- diffusion layers (depth small -> trace-time unroll) -----------------
    # TODO(synk): switch to lax.fori_loop with dynamic wqkf_ref[step] indexing
    #             if depth grows beyond ~8 (vreg live-range / code-size).
    for step in range(depth):
        xn = _layernorm(
            x,
            slab_ref[off["ln_g"] + step:off["ln_g"] + step + 1, :Dm],
            slab_ref[off["ln_b"] + step:off["ln_b"] + step + 1, :Dm])

        # one wide projection: [scale*WQ | WK | tau*blockdiag(WV)]
        proj = jnp.dot(xn, wqkf_ref[step], preferred_element_type=jnp.float32)
        q = proj[:, 0:Dm]             # scale already folded into WQ
        k = proj[:, Dm:2 * Dm]
        fw = proj[:, 2 * Dm:3 * Dm]   # tau already folded into blockdiag(WV)

        # flat attention over the (BN, Dm) slab with cross-batch masking
        logits = jax.lax.dot_general(
            q, k, (((1,), (1,)), ((), ())),
            preferred_element_type=jnp.float32) + abias
        logits = logits - jnp.max(logits, axis=-1, keepdims=True)
        e = jnp.exp(logits)
        # exact reciprocal: 32-element vector -> cost is nil; keeps 1e-4 numerics
        a = e * pl.reciprocal(jnp.sum(e, axis=-1, keepdims=True), approx=False)

        av = jnp.dot(a, fw, preferred_element_type=jnp.float32)
        x = av + xn                                             # residual on Xn

    # ---- head: per-batch mean over patches as one tiny matmul -> classifier --
    pool = slab_ref[off["pool"]:off["pool"] + B, :BN]           # (B, BN), 1/N blocks
    m = jnp.dot(pool, x, preferred_element_type=jnp.float32)    # (B, Dm)
    out_ref[...] = (jnp.dot(m, wlast_ref[...],
                            preferred_element_type=jnp.float32)
                    + slab_ref[off["b_last"]:off["b_last"] + 1, :CP])


# ---------------------------------------------------------------------------
# Wrapper / parameter prep
# ---------------------------------------------------------------------------
def extract_patches(image, patch_size):
    # 'b c (h p1) (w p2) -> b (h w) (p1 p2 c)'
    B, C, H, W = image.shape
    p = patch_size
    x = image.reshape(B, C, H // p, p, W // p, p)
    x = jnp.transpose(x, (0, 2, 4, 3, 5, 1))                    # b h w p1 p2 c
    return x.reshape(B, (H // p) * (W // p), p * p * C)


def prepare_params(pr, *, heads, depth, batch, vdim, tau):
    """One-time prep: fold scale/tau into the per-layer concatenated projection
    [scale*WQ | WK | tau*blockdiag(WV)], pre-tile pos over batch, build the
    pooling matrix and the block-diagonal attention bias, and pack all small
    row-vectors into one lane-dense slab (a single DMA at kernel start)."""
    Pd, Dm = pr["w_emb"].shape
    C = pr["w_last"].shape[1]
    N = pr["pos"].shape[0]
    B = batch
    BN = B * N
    PdP = _round_up(Pd, LANE)
    CP = _round_up(C, LANE)
    lane = max(PdP, CP, _round_up(Dm, LANE), LANE)
    scale = float(vdim) ** (-0.5)

    wqkf = []
    for i in range(depth):
        wblock = jnp.kron(jnp.eye(heads, dtype=jnp.float32), pr["WVs"][i])
        wqkf.append(jnp.concatenate(
            [scale * pr["WQs"][i], pr["WKs"][i], float(tau) * wblock], axis=1))
    w_qkf = jnp.stack(wqkf)                                     # (depth, Dm, 3*Dm)

    off = _slab_layout(depth, B, N)

    def pad_to_lane(v):
        v = jnp.asarray(v, jnp.float32)
        if v.ndim == 1:
            v = v.reshape(1, -1)
        return jnp.pad(v, ((0, 0), (0, lane - v.shape[1])))

    rows = [
        pad_to_lane(pr["ln1_g"]), pad_to_lane(pr["ln1_b"]), pad_to_lane(pr["b_emb"]),
        pad_to_lane(pr["ln2_g"]), pad_to_lane(pr["ln2_b"]), pad_to_lane(pr["b_last"]),
    ]
    rows += [pad_to_lane(pr["ln_g"][i]) for i in range(depth)]
    rows += [pad_to_lane(pr["ln_b"][i]) for i in range(depth)]
    # (B, BN) per-batch mean-pooling matrix (1/N within each batch block)
    pool = jnp.kron(jnp.eye(B, dtype=jnp.float32),
                    jnp.full((1, N), 1.0 / N, jnp.float32))
    rows.append(pad_to_lane(pool))
    # positional embedding pre-tiled over batch -> added on the flat slab
    rows.append(pad_to_lane(jnp.tile(pr["pos"], (B, 1))))
    # block-diagonal additive attention bias (0 within batch, -1e30 across)
    blockdiag = jnp.kron(jnp.eye(B, dtype=jnp.float32),
                         jnp.ones((N, N), jnp.float32))
    rows.append(pad_to_lane(jnp.where(blockdiag > 0.5, 0.0, NEG_INF)))

    slab = jnp.concatenate(rows, axis=0)
    assert slab.shape[0] == off["rows"]
    slab = jnp.pad(slab, ((0, _round_up(off["rows"], 8) - off["rows"]), (0, 0)))

    return {
        "slab": slab,                                            # (rows, lane)
        "w_emb": jnp.pad(pr["w_emb"], ((0, PdP - Pd), (0, 0))),  # (PdP, Dm)
        "w_qkf": w_qkf,                                          # (depth, Dm, 3*Dm)
        "w_last": jnp.pad(pr["w_last"], ((0, 0), (0, CP - C))),  # (Dm, CP)
    }


@functools.partial(jax.jit,
                   static_argnames=("patch_size", "depth", "num_classes"))
def simple_transformer_forward(image, prep, *, patch_size, depth, num_classes):
    patches = extract_patches(image, patch_size)                 # (B, N, Pd)
    B, N, Pd = patches.shape
    PdP = prep["w_emb"].shape[0]
    CP = prep["w_last"].shape[1]

    # fold batch into the sublane axis + pad patch_dim lanes
    p2d = jnp.pad(patches.reshape(B * N, Pd), ((0, 0), (0, PdP - Pd)))

    kern = functools.partial(fused_forward_kernel, B=B, N=N, Pd=Pd, depth=depth)

    # Grid-less pallas_call: 5 whole-array operands, everything VMEM-resident,
    # no pipeline machinery, no per-input double buffering.
    out = pl.pallas_call(
        kern,
        out_shape=jax.ShapeDtypeStruct((B, CP), jnp.float32),
    )(p2d, prep["slab"], prep["w_emb"], prep["w_qkf"], prep["w_last"])
    return out[:, :num_classes]


# ---------------------------------------------------------------------------
# Pure-JAX reference (mirrors the PyTorch eval-mode forward)
# ---------------------------------------------------------------------------
def reference_forward(image, pr, *, patch_size, heads, vdim, tau, depth):
    patches = extract_patches(image, patch_size)
    B, N, _ = patches.shape
    x = _layernorm(patches, pr["ln1_g"][0], pr["ln1_b"][0])
    x = x @ pr["w_emb"] + pr["b_emb"][0]
    x = _layernorm(x, pr["ln2_g"][0], pr["ln2_b"][0])
    X = x + pr["pos"][None]
    d = vdim
    for step in range(depth):
        Xn = _layernorm(X, pr["ln_g"][step][0], pr["ln_b"][step][0])
        Q = Xn @ pr["WQs"][step]
        K = Xn @ pr["WKs"][step]
        logits = jnp.einsum("bnd,bmd->bnm", Q, K) * (d ** (-0.5))
        A = jax.nn.softmax(logits, axis=-1)
        F = Xn.reshape(B, N, heads, d).transpose(0, 2, 1, 3)     # b h n d
        FW = jnp.einsum("bhnd,de->bhne", F, pr["WVs"][step])
        FWf = FW.transpose(0, 2, 1, 3).reshape(B, N, heads * d)  # b n (h d)
        X = tau * jnp.einsum("bnm,bmd->bnd", A, FWf) + Xn
    return X.mean(axis=1) @ pr["w_last"] + pr["b_last"][0]


# ---------------------------------------------------------------------------
# Deterministic parameter init (matches __init__ shapes; synthetic values)
# ---------------------------------------------------------------------------
def init_params(key, *, C, H, W, patch_size, dim, heads, depth, num_classes):
    Dm = dim * heads
    Pd = C * patch_size * patch_size
    N = (H // patch_size) * (W // patch_size)
    keys = iter(jax.random.split(key, 8 + 3 * depth))

    def unif(k, shape, bound):
        return jax.random.uniform(k, shape, jnp.float32, -bound, bound)

    pr = {
        "ln1_g": jnp.ones((1, Pd), jnp.float32),
        "ln1_b": jnp.zeros((1, Pd), jnp.float32),
        "w_emb": unif(next(keys), (Pd, Dm), 1.0 / np.sqrt(Pd)),
        "b_emb": unif(next(keys), (1, Dm), 1.0 / np.sqrt(Pd)),
        "ln2_g": jnp.ones((1, Dm), jnp.float32),
        "ln2_b": jnp.zeros((1, Dm), jnp.float32),
        "pos": jax.random.normal(next(keys), (N, Dm), jnp.float32),
        "w_last": unif(next(keys), (Dm, num_classes), 1.0 / np.sqrt(Dm)),
        "b_last": unif(next(keys), (1, num_classes), 1.0 / np.sqrt(Dm)),
        "WVs": [], "WKs": [], "WQs": [], "ln_g": [], "ln_b": [],
    }
    for _ in range(depth):
        pr["WVs"].append(unif(next(keys), (dim, dim), np.sqrt(6.0 / dim)))
        pr["WKs"].append(unif(next(keys), (Dm, Dm), np.sqrt(6.0 / Dm)))
        pr["WQs"].append(unif(next(keys), (Dm, Dm), np.sqrt(6.0 / Dm)))
        pr["ln_g"].append(jnp.ones((1, Dm), jnp.float32))
        pr["ln_b"].append(jnp.zeros((1, Dm), jnp.float32))
    return pr


if __name__ == "__main__":
    # Small config: input_size=(4,16,16), patch_size=4, depth=2, dim=32, heads=4
    B, C, H, W = 2, 4, 16, 16
    patch_size = 4
    dim, heads, depth, num_classes, tau = 32, 4, 2, 10, 1.0

    key = jax.random.PRNGKey(0)
    kp, kx = jax.random.split(key)
    params = init_params(kp, C=C, H=H, W=W, patch_size=patch_size, dim=dim,
                         heads=heads, depth=depth, num_classes=num_classes)
    image = jax.random.normal(kx, (B, C, H, W), jnp.float32)

    prep = prepare_params(params, heads=heads, depth=depth, batch=B,
                          vdim=dim, tau=tau)                    # one-time prep
    pred = simple_transformer_forward(image, prep, patch_size=patch_size,
                                      depth=depth, num_classes=num_classes)
    pred = jax.block_until_ready(pred)

    ref = reference_forward(image, params, patch_size=patch_size, heads=heads,
                            vdim=dim, tau=tau, depth=depth)
    np.testing.assert_allclose(np.asarray(pred), np.asarray(ref),
                               rtol=1e-4, atol=1e-4)
    print("KERNEL_OK")
</pallas_src>

<mosaic_0001>
module attributes {stable_mosaic.version = 11 : i64} {
  func.func @fused_forward_kernel(%arg0: memref<32x128xf32, #tpu.memory_space<vmem>>, %arg1: memref<80x128xf32, #tpu.memory_space<vmem>>, %arg2: memref<128x128xf32, #tpu.memory_space<vmem>>, %arg3: memref<2x128x384xf32, #tpu.memory_space<vmem>>, %arg4: memref<128x128xf32, #tpu.memory_space<vmem>>, %arg5: memref<2x128xf32, #tpu.memory_space<vmem>>) attributes {dimension_semantics = [], scalar_prefetch = 0 : i64, scratch_operands = 0 : i64, tpu.core_type = #tpu.core_type<tc>} {
    %c0 = arith.constant 0 : index
    %c0_0 = arith.constant 0 : index
    %0 = vector.load %arg0[%c0, %c0_0] : memref<32x128xf32, #tpu.memory_space<vmem>>, vector<32x128xf32>
    %cst = arith.constant dense<0.000000e+00> : vector<32xf32>
    %1 = vector.multi_reduction <add>, %0, %cst [1] : vector<32x128xf32> to vector<32xf32>
    %2 = vector.shape_cast %1 : vector<32xf32> to vector<32x1xf32>
    %cst_1 = arith.constant 1.562500e-02 : f32
    %3 = vector.broadcast %cst_1 : f32 to vector<32x1xf32>
    %4 = arith.mulf %2, %3 : vector<32x1xf32>
    %5 = arith.mulf %0, %0 : vector<32x128xf32>
    %cst_2 = arith.constant dense<0.000000e+00> : vector<32xf32>
    %6 = vector.multi_reduction <add>, %5, %cst_2 [1] : vector<32x128xf32> to vector<32xf32>
    %7 = vector.shape_cast %6 : vector<32xf32> to vector<32x1xf32>
    %cst_3 = arith.constant 1.562500e-02 : f32
    %8 = vector.broadcast %cst_3 : f32 to vector<32x1xf32>
    %9 = arith.mulf %7, %8 : vector<32x1xf32>
    %10 = arith.mulf %4, %4 : vector<32x1xf32>
    %11 = arith.subf %9, %10 : vector<32x1xf32>
    %12 = vector.broadcast %4 : vector<32x1xf32> to vector<32x128xf32>
    %13 = arith.subf %0, %12 : vector<32x128xf32>
    %cst_4 = arith.constant 9.99999974E-6 : f32
    %14 = vector.broadcast %cst_4 : f32 to vector<32x1xf32>
    %15 = arith.addf %11, %14 : vector<32x1xf32>
    %16 = math.rsqrt %15 : vector<32x1xf32>
    %17 = vector.broadcast %16 : vector<32x1xf32> to vector<32x128xf32>
    %18 = arith.mulf %13, %17 : vector<32x128xf32>
    %c0_5 = arith.constant 0 : index
    %c0_6 = arith.constant 0 : index
    %19 = vector.load %arg1[%c0_5, %c0_6] : memref<80x128xf32, #tpu.memory_space<vmem>>, vector<1x128xf32>
    %20 = vector.broadcast %19 : vector<1x128xf32> to vector<32x128xf32>
    %21 = arith.mulf %18, %20 : vector<32x128xf32>
    %c1 = arith.constant 1 : index
    %c0_7 = arith.constant 0 : index
    %22 = vector.load %arg1[%c1, %c0_7] : memref<80x128xf32, #tpu.memory_space<vmem>>, vector<1x128xf32>
    %23 = vector.broadcast %22 : vector<1x128xf32> to vector<32x128xf32>
    %24 = arith.addf %21, %23 : vector<32x128xf32>
    %c0_8 = arith.constant 0 : index
    %c0_9 = arith.constant 0 : index
    %25 = vector.load %arg2[%c0_8, %c0_9] : memref<128x128xf32, #tpu.memory_space<vmem>>, vector<128x128xf32>
    %cst_10 = arith.constant dense<0.000000e+00> : vector<32x128xf32>
    %26 = tpu.matmul %24, %25, %cst_10 {dimension_numbers = #tpu.dot_dimension_numbers<[1], [0], [0], [1], [0, 0, 1, 1], [], []>} : vector<32x128xf32>, vector<128x128xf32>, vector<32x128xf32> -> vector<32x128xf32>
    %c2 = arith.constant 2 : index
    %c0_11 = arith.constant 0 : index
    %27 = vector.load %arg1[%c2, %c0_11] : memref<80x128xf32, #tpu.memory_space<vmem>>, vector<1x128xf32>
    %28 = vector.broadcast %27 : vector<1x128xf32> to vector<32x128xf32>
    %29 = arith.addf %26, %28 : vector<32x128xf32>
    %c3 = arith.constant 3 : index
    %c0_12 = arith.constant 0 : index
    %30 = vector.load %arg1[%c3, %c0_12] : memref<80x128xf32, #tpu.memory_space<vmem>>, vector<1x128xf32>
    %c4 = arith.constant 4 : index
    %c0_13 = arith.constant 0 : index
    %31 = vector.load %arg1[%c4, %c0_13] : memref<80x128xf32, #tpu.memory_space<vmem>>, vector<1x128xf32>
    %cst_14 = arith.constant dense<0.000000e+00> : vector<32xf32>
    %32 = vector.multi_reduction <add>, %29, %cst_14 [1] : vector<32x128xf32> to vector<32xf32>
    %33 = vector.shape_cast %32 : vector<32xf32> to vector<32x1xf32>
    %cst_15 = arith.constant 1.280000e+02 : f32
    %34 = vector.broadcast %cst_15 : f32 to vector<32x1xf32>
    %35 = arith.divf %33, %34 : vector<32x1xf32>
    %36 = vector.broadcast %35 : vector<32x1xf32> to vector<32x128xf32>
    %37 = arith.subf %29, %36 : vector<32x128xf32>
    %38 = arith.mulf %37, %37 : vector<32x128xf32>
    %cst_16 = arith.constant dense<0.000000e+00> : vector<32xf32>
    %39 = vector.multi_reduction <add>, %38, %cst_16 [1] : vector<32x128xf32> to vector<32xf32>
    %40 = vector.shape_cast %39 : vector<32xf32> to vector<32x1xf32>
    %cst_17 = arith.constant 1.280000e+02 : f32
    %41 = vector.broadcast %cst_17 : f32 to vector<32x1xf32>
    %42 = arith.divf %40, %41 : vector<32x1xf32>
    %43 = vector.broadcast %35 : vector<32x1xf32> to vector<32x128xf32>
    %44 = arith.subf %29, %43 : vector<32x128xf32>
    %cst_18 = arith.constant 9.99999974E-6 : f32
    %45 = vector.broadcast %cst_18 : f32 to vector<32x1xf32>
    %46 = arith.addf %42, %45 : vector<32x1xf32>
    %47 = math.rsqrt %46 : vector<32x1xf32>
    %48 = vector.broadcast %47 : vector<32x1xf32> to vector<32x128xf32>
    %49 = arith.mulf %44, %48 : vector<32x128xf32>
    %50 = vector.broadcast %30 : vector<1x128xf32> to vector<32x128xf32>
    %51 = arith.mulf %49, %50 : vector<32x128xf32>
    %52 = vector.broadcast %31 : vector<1x128xf32> to vector<32x128xf32>
    %53 = arith.addf %51, %52 : vector<32x128xf32>
    %c12 = arith.constant 12 : index
    %c0_19 = arith.constant 0 : index
    %54 = vector.load %arg1[%c12, %c0_19] : memref<80x128xf32, #tpu.memory_space<vmem>>, vector<32x128xf32>
    %55 = arith.addf %53, %54 : vector<32x128xf32>
    %c44 = arith.constant 44 : index
    %c0_20 = arith.constant 0 : index
    %56 = vector.load %arg1[%c44, %c0_20] : memref<80x128xf32, #tpu.memory_space<vmem>>, vector<32x32xf32>
    %c6 = arith.constant 6 : index
    %c0_21 = arith.constant 0 : index
    %57 = vector.load %arg1[%c6, %c0_21] : memref<80x128xf32, #tpu.memory_space<vmem>>, vector<1x128xf32>
    %c8 = arith.constant 8 : index
    %c0_22 = arith.constant 0 : index
    %58 = vector.load %arg1[%c8, %c0_22] : memref<80x128xf32, #tpu.memory_space<vmem>>, vector<1x128xf32>
    %cst_23 = arith.constant dense<0.000000e+00> : vector<32xf32>
    %59 = vector.multi_reduction <add>, %55, %cst_23 [1] : vector<32x128xf32> to vector<32xf32>
    %60 = vector.shape_cast %59 : vector<32xf32> to vector<32x1xf32>
    %cst_24 = arith.constant 1.280000e+02 : f32
    %61 = vector.broadcast %cst_24 : f32 to vector<32x1xf32>
    %62 = arith.divf %60, %61 : vector<32x1xf32>
    %63 = vector.broadcast %62 : vector<32x1xf32> to vector<32x128xf32>
    %64 = arith.subf %55, %63 : vector<32x128xf32>
    %65 = arith.mulf %64, %64 : vector<32x128xf32>
    %cst_25 = arith.constant dense<0.000000e+00> : vector<32xf32>
    %66 = vector.multi_reduction <add>, %65, %cst_25 [1] : vector<32x128xf32> to vector<32xf32>
    %67 = vector.shape_cast %66 : vector<32xf32> to vector<32x1xf32>
    %cst_26 = arith.constant 1.280000e+02 : f32
    %68 = vector.broadcast %cst_26 : f32 to vector<32x1xf32>
    %69 = arith.divf %67, %68 : vector<32x1xf32>
    %70 = vector.broadcast %62 : vector<32x1xf32> to vector<32x128xf32>
    %71 = arith.subf %55, %70 : vector<32x128xf32>
    %cst_27 = arith.constant 9.99999974E-6 : f32
    %72 = vector.broadcast %cst_27 : f32 to vector<32x1xf32>
    %73 = arith.addf %69, %72 : vector<32x1xf32>
    %74 = math.rsqrt %73 : vector<32x1xf32>
    %75 = vector.broadcast %74 : vector<32x1xf32> to vector<32x128xf32>
    %76 = arith.mulf %71, %75 : vector<32x128xf32>
    %77 = vector.broadcast %57 : vector<1x128xf32> to vector<32x128xf32>
    %78 = arith.mulf %76, %77 : vector<32x128xf32>
    %79 = vector.broadcast %58 : vector<1x128xf32> to vector<32x128xf32>
    %80 = arith.addf %78, %79 : vector<32x128xf32>
    %c0_28 = arith.constant 0 : index
    %c0_29 = arith.constant 0 : index
    %c0_30 = arith.constant 0 : index
    %81 = vector.load %arg3[%c0_28, %c0_29, %c0_30] : memref<2x128x384xf32, #tpu.memory_space<vmem>>, vector<1x128x384xf32>
    %82 = vector.shape_cast %81 : vector<1x128x384xf32> to vector<128x384xf32>
    %cst_31 = arith.constant dense<0.000000e+00> : vector<32x384xf32>
    %83 = tpu.matmul %80, %82, %cst_31 {dimension_numbers = #tpu.dot_dimension_numbers<[1], [0], [0], [1], [0, 0, 1, 1], [], []>} : vector<32x128xf32>, vector<128x384xf32>, vector<32x384xf32> -> vector<32x384xf32>
    %84 = vector.extract_strided_slice %83 {offsets = [0, 0], sizes = [32, 128], strides = [1, 1]} : vector<32x384xf32> to vector<32x128xf32>
    %85 = vector.extract_strided_slice %83 {offsets = [0, 128], sizes = [32, 128], strides = [1, 1]} : vector<32x384xf32> to vector<32x128xf32>
    %86 = vector.extract_strided_slice %83 {offsets = [0, 256], sizes = [32, 128], strides = [1, 1]} : vector<32x384xf32> to vector<32x128xf32>
    %cst_32 = arith.constant dense<0.000000e+00> : vector<32x32xf32>
    %87 = tpu.matmul %84, %85, %cst_32 {dimension_numbers = #tpu.dot_dimension_numbers<[1], [1], [0], [0], [0, 0, 1, 0], [], []>} : vector<32x128xf32>, vector<32x128xf32>, vector<32x32xf32> -> vector<32x32xf32>
    %88 = arith.addf %87, %56 : vector<32x32xf32>
    %cst_33 = arith.constant dense<0xFF800000> : vector<32xf32>
    %89 = vector.multi_reduction <maximumf>, %88, %cst_33 [1] : vector<32x32xf32> to vector<32xf32>
    %90 = vector.shape_cast %89 : vector<32xf32> to vector<32x1xf32>
    %91 = vector.broadcast %90 : vector<32x1xf32> to vector<32x32xf32>
    %92 = arith.subf %88, %91 : vector<32x32xf32>
    %93 = math.exp %92 : vector<32x32xf32>
    %cst_34 = arith.constant dense<0.000000e+00> : vector<32xf32>
    %94 = vector.multi_reduction <add>, %93, %cst_34 [1] : vector<32x32xf32> to vector<32xf32>
    %95 = vector.shape_cast %94 : vector<32xf32> to vector<32x1xf32>
    %96 = tpu.reciprocal %95 : vector<32x1xf32> -> vector<32x1xf32>
    %97 = vector.broadcast %96 : vector<32x1xf32> to vector<32x32xf32>
    %98 = arith.mulf %93, %97 : vector<32x32xf32>
    %cst_35 = arith.constant dense<0.000000e+00> : vector<32x128xf32>
    %99 = tpu.matmul %98, %86, %cst_35 {dimension_numbers = #tpu.dot_dimension_numbers<[1], [0], [0], [1], [0, 0, 1, 1], [], []>} : vector<32x32xf32>, vector<32x128xf32>, vector<32x128xf32> -> vector<32x128xf32>
    %100 = arith.addf %99, %80 : vector<32x128xf32>
    %c7 = arith.constant 7 : index
    %c0_36 = arith.constant 0 : index
    %101 = vector.load %arg1[%c7, %c0_36] : memref<80x128xf32, #tpu.memory_space<vmem>>, vector<1x128xf32>
    %c9 = arith.constant 9 : index
    %c0_37 = arith.constant 0 : index
    %102 = vector.load %arg1[%c9, %c0_37] : memref<80x128xf32, #tpu.memory_space<vmem>>, vector<1x128xf32>
    %cst_38 = arith.constant dense<0.000000e+00> : vector<32xf32>
    %103 = vector.multi_reduction <add>, %100, %cst_38 [1] : vector<32x128xf32> to vector<32xf32>
    %104 = vector.shape_cast %103 : vector<32xf32> to vector<32x1xf32>
    %cst_39 = arith.constant 1.280000e+02 : f32
    %105 = vector.broadcast %cst_39 : f32 to vector<32x1xf32>
    %106 = arith.divf %104, %105 : vector<32x1xf32>
    %107 = vector.broadcast %106 : vector<32x1xf32> to vector<32x128xf32>
    %108 = arith.subf %100, %107 : vector<32x128xf32>
    %109 = arith.mulf %108, %108 : vector<32x128xf32>
    %cst_40 = arith.constant dense<0.000000e+00> : vector<32xf32>
    %110 = vector.multi_reduction <add>, %109, %cst_40 [1] : vector<32x128xf32> to vector<32xf32>
    %111 = vector.shape_cast %110 : vector<32xf32> to vector<32x1xf32>
    %cst_41 = arith.constant 1.280000e+02 : f32
    %112 = vector.broadcast %cst_41 : f32 to vector<32x1xf32>
    %113 = arith.divf %111, %112 : vector<32x1xf32>
    %114 = vector.broadcast %106 : vector<32x1xf32> to vector<32x128xf32>
    %115 = arith.subf %100, %114 : vector<32x128xf32>
    %cst_42 = arith.constant 9.99999974E-6 : f32
    %116 = vector.broadcast %cst_42 : f32 to vector<32x1xf32>
    %117 = arith.addf %113, %116 : vector<32x1xf32>
    %118 = math.rsqrt %117 : vector<32x1xf32>
    %119 = vector.broadcast %118 : vector<32x1xf32> to vector<32x128xf32>
    %120 = arith.mulf %115, %119 : vector<32x128xf32>
    %121 = vector.broadcast %101 : vector<1x128xf32> to vector<32x128xf32>
    %122 = arith.mulf %120, %121 : vector<32x128xf32>
    %123 = vector.broadcast %102 : vector<1x128xf32> to vector<32x128xf32>
    %124 = arith.addf %122, %123 : vector<32x128xf32>
    %c1_43 = arith.constant 1 : index
    %c0_44 = arith.constant 0 : index
    %c0_45 = arith.constant 0 : index
    %125 = vector.load %arg3[%c1_43, %c0_44, %c0_45] : memref<2x128x384xf32, #tpu.memory_space<vmem>>, vector<1x128x384xf32>
    %126 = vector.shape_cast %125 : vector<1x128x384xf32> to vector<128x384xf32>
    %cst_46 = arith.constant dense<0.000000e+00> : vector<32x384xf32>
    %127 = tpu.matmul %124, %126, %cst_46 {dimension_numbers = #tpu.dot_dimension_numbers<[1], [0], [0], [1], [0, 0, 1, 1], [], []>} : vector<32x128xf32>, vector<128x384xf32>, vector<32x384xf32> -> vector<32x384xf32>
    %128 = vector.extract_strided_slice %127 {offsets = [0, 0], sizes = [32, 128], strides = [1, 1]} : vector<32x384xf32> to vector<32x128xf32>
    %129 = vector.extract_strided_slice %127 {offsets = [0, 128], sizes = [32, 128], strides = [1, 1]} : vector<32x384xf32> to vector<32x128xf32>
    %130 = vector.extract_strided_slice %127 {offsets = [0, 256], sizes = [32, 128], strides = [1, 1]} : vector<32x384xf32> to vector<32x128xf32>
    %cst_47 = arith.constant dense<0.000000e+00> : vector<32x32xf32>
    %131 = tpu.matmul %128, %129, %cst_47 {dimension_numbers = #tpu.dot_dimension_numbers<[1], [1], [0], [0], [0, 0, 1, 0], [], []>} : vector<32x128xf32>, vector<32x128xf32>, vector<32x32xf32> -> vector<32x32xf32>
    %132 = arith.addf %131, %56 : vector<32x32xf32>
    %cst_48 = arith.constant dense<0xFF800000> : vector<32xf32>
    %133 = vector.multi_reduction <maximumf>, %132, %cst_48 [1] : vector<32x32xf32> to vector<32xf32>
    %134 = vector.shape_cast %133 : vector<32xf32> to vector<32x1xf32>
    %135 = vector.broadcast %134 : vector<32x1xf32> to vector<32x32xf32>
    %136 = arith.subf %132, %135 : vector<32x32xf32>
    %137 = math.exp %136 : vector<32x32xf32>
    %cst_49 = arith.constant dense<0.000000e+00> : vector<32xf32>
    %138 = vector.multi_reduction <add>, %137, %cst_49 [1] : vector<32x32xf32> to vector<32xf32>
    %139 = vector.shape_cast %138 : vector<32xf32> to vector<32x1xf32>
    %140 = tpu.reciprocal %139 : vector<32x1xf32> -> vector<32x1xf32>
    %141 = vector.broadcast %140 : vector<32x1xf32> to vector<32x32xf32>
    %142 = arith.mulf %137, %141 : vector<32x32xf32>
    %cst_50 = arith.constant dense<0.000000e+00> : vector<32x128xf32>
    %143 = tpu.matmul %142, %130, %cst_50 {dimension_numbers = #tpu.dot_dimension_numbers<[1], [0], [0], [1], [0, 0, 1, 1], [], []>} : vector<32x32xf32>, vector<32x128xf32>, vector<32x128xf32> -> vector<32x128xf32>
    %144 = arith.addf %143, %124 : vector<32x128xf32>
    %c10 = arith.constant 10 : index
    %c0_51 = arith.constant 0 : index
    %145 = vector.load %arg1[%c10, %c0_51] : memref<80x128xf32, #tpu.memory_space<vmem>>, vector<2x32xf32>
    %cst_52 = arith.constant dense<0.000000e+00> : vector<2x128xf32>
    %146 = tpu.matmul %145, %144, %cst_52 {dimension_numbers = #tpu.dot_dimension_numbers<[1], [0], [0], [1], [0, 0, 1, 1], [], []>} : vector<2x32xf32>, vector<32x128xf32>, vector<2x128xf32> -> vector<2x128xf32>
    %c0_53 = arith.constant 0 : index
    %c0_54 = arith.constant 0 : index
    %147 = vector.load %arg4[%c0_53, %c0_54] : memref<128x128xf32, #tpu.memory_space<vmem>>, vector<128x128xf32>
    %cst_55 = arith.constant dense<0.000000e+00> : vector<2x128xf32>
    %148 = tpu.matmul %146, %147, %cst_55 {dimension_numbers = #tpu.dot_dimension_numbers<[1], [0], [0], [1], [0, 0, 1, 1], [], []>} : vector<2x128xf32>, vector<128x128xf32>, vector<2x128xf32> -> vector<2x128xf32>
    %c5 = arith.constant 5 : index
    %c0_56 = arith.constant 0 : index
    %149 = vector.load %arg1[%c5, %c0_56] : memref<80x128xf32, #tpu.memory_space<vmem>>, vector<1x128xf32>
    %150 = vector.broadcast %149 : vector<1x128xf32> to vector<2x128xf32>
    %151 = arith.addf %148, %150 : vector<2x128xf32>
    %c0_57 = arith.constant 0 : index
    %c0_58 = arith.constant 0 : index
    %152 = vector.load %arg5[%c0_57, %c0_58] : memref<2x128xf32, #tpu.memory_space<vmem>>, vector<2x128xf32>
    tpu.vector_store %arg5[%c0_57, %c0_58], %151 {strides = array<i32>} : memref<2x128xf32, #tpu.memory_space<vmem>>, vector<2x128xf32>,
    return
  }
}

</mosaic_0001>

<llo_original>
// kernel: simple_transformer_forward.1
$region0: #{simple_transformer_forward.1}
  #allocation0 [shape = 'u32[]', space=smem, size = 0x4, offset = 0x4, fixed_abs, tag = 'smem constant byte address 0x4 - core index']
  #allocation1 [shape = 'u32[72,128]{1,0:T(1,128)}', space=vmem, size = 0x9000, scoped, tag = 'internal scratch']
  %s0 = inlined_call_operand.vmem [shape: f32[32,128], index: 0, kind: input, shape index: {}]
  %s1 = inlined_call_operand.vmem [shape: f32[80,128], index: 1, kind: input, shape index: {}]
  %s2 = inlined_call_operand.vmem [shape: f32[128,128], index: 2, kind: input, shape index: {}]
  %s3 = inlined_call_operand.vmem [shape: f32[2,128,384], index: 3, kind: input, shape index: {}]
  %s4 = inlined_call_operand.vmem [shape: f32[128,128], index: 4, kind: input, shape index: {}]
  %s5 = inlined_call_operand.hbm [shape: f32[2,128], index: 5, kind: output, shape index: {}]
  %s6 = sld [smem:[#allocation0]]
  $region30: #{simple_transformer_forward.1} parent=0
    _
  %s8 = ssub.s32 1, %s6
  %s9 = scalar_select 0, %s8, %s6
  $region1: #{simple_transformer_forward.1} parent=0
    #allocation2 [shape = 'u8[1024]{0}', space=vmem, size = 0x400, scoped, tag = 'output window, operand 0, single buffered']
    #allocation3 [shape = 's32[1]{0}', space=sflag, size = 0x4, scoped, tag = 'scoped memory for simple_transformer_forward.1']
    %10 = vsyncpa [#allocation3], 0
    // Predicated region
    $region2: #{simple_transformer_forward.1} parent=1 // pred_check
      _
    $region3: #{simple_transformer_forward.1} parent=1 // pred_check_branch
      %12 = sbr.rel (0) target = $region5
    $region4: #{simple_transformer_forward.1} parent=1 // pred_region
      _
    $region5: #{simple_transformer_forward.1} parent=1 // pred_fallthru
      _
    // Predicated region
    $region6: #{simple_transformer_forward.1} parent=1 // pred_check
      _
    $region7: #{simple_transformer_forward.1} parent=1 // pred_check_branch
      %14 = sbr.rel (0) target = $region9
    $region8: #{simple_transformer_forward.1} parent=1 // pred_region
      _
    $region9: #{simple_transformer_forward.1} parent=1 // pred_fallthru
      _
    // Predicated region
    $region10: #{simple_transformer_forward.1} parent=1 // pred_check
      _
    $region11: #{simple_transformer_forward.1} parent=1 // pred_check_branch
      %16 = sbr.rel (0) target = $region13
    $region12: #{simple_transformer_forward.1} parent=1 // pred_region
      _
    $region13: #{simple_transformer_forward.1} parent=1 // pred_fallthru
      _
    // Predicated region
    $region14: #{simple_transformer_forward.1} parent=1 // pred_check
      _
    $region15: #{simple_transformer_forward.1} parent=1 // pred_check_branch
      %18 = sbr.rel (0) target = $region17
    $region16: #{simple_transformer_forward.1} parent=1 // pred_region
      _
    $region17: #{simple_transformer_forward.1} parent=1 // pred_fallthru
      _
    // Predicated region
    $region18: #{simple_transformer_forward.1} parent=1 // pred_check
      _
    $region19: #{simple_transformer_forward.1} parent=1 // pred_check_branch
      %20 = sbr.rel (0) target = $region21
    $region20: #{simple_transformer_forward.1} parent=1 // pred_region
      _
    $region21: #{simple_transformer_forward.1} parent=1 // pred_fallthru
      _
    %v21 = vld [vmem:[%s0] sm:$0xff]
    %v22 = vld [vmem:[%s0 + $0x8] sm:$0xff]
    %v23 = vld [vmem:[%s0 + $0x10] sm:$0xff]
    %v24 = vld [vmem:[%s0 + $0x18] sm:$0xff]
    %25 = vadd.xlane.f32.xlu0 %v21
    %v26 = vpop.xlane.xlu0 %25
    %27 = vadd.xlane.f32.xlu0 %v22
    %v28 = vpop.xlane.xlu0 %27
    %29 = vadd.xlane.f32.xlu0 %v23
    %v30 = vpop.xlane.xlu0 %29
    %31 = vadd.xlane.f32.xlu0 %v24
    %v32 = vpop.xlane.xlu0 %31
    %v33 = vmul.f32 %v26, 0.015625
    %v34 = vmul.f32 %v28, 0.015625
    %v35 = vmul.f32 %v30, 0.015625
    %v36 = vmul.f32 %v32, 0.015625
    %v37 = vmul.f32 %v21, %v21
    %v38 = vmul.f32 %v22, %v22
    %v39 = vmul.f32 %v23, %v23
    %v40 = vmul.f32 %v24, %v24
    %41 = vadd.xlane.f32.xlu0 %v37
    %v42 = vpop.xlane.xlu0 %41
    %43 = vadd.xlane.f32.xlu0 %v38
    %v44 = vpop.xlane.xlu0 %43
    %45 = vadd.xlane.f32.xlu0 %v39
    %v46 = vpop.xlane.xlu0 %45
    %47 = vadd.xlane.f32.xlu0 %v40
    %v48 = vpop.xlane.xlu0 %47
    %v49 = vmul.f32 %v42, 0.015625
    %v50 = vmul.f32 %v44, 0.015625
    %v51 = vmul.f32 %v46, 0.015625
    %v52 = vmul.f32 %v48, 0.015625
    %v53 = vmul.f32 %v33, %v33
    %v54 = vmul.f32 %v34, %v34
    %v55 = vmul.f32 %v35, %v35
    %v56 = vmul.f32 %v36, %v36
    %v57 = vsub.f32 %v49, %v53
    %v58 = vsub.f32 %v50, %v54
    %v59 = vsub.f32 %v51, %v55
    %v60 = vsub.f32 %v52, %v56
    %v61 = vsub.f32 %v21, %v33
    %v62 = vsub.f32 %v22, %v34
    %v63 = vsub.f32 %v23, %v35
    %v64 = vsub.f32 %v24, %v36
    %v65 = vadd.f32 %v57, 1e-05
    %v66 = vadd.f32 %v58, 1e-05
    %v67 = vadd.f32 %v59, 1e-05
    %v68 = vadd.f32 %v60, 1e-05
    %v69 = vrsqrt.pop %v65
    %v70 = vmul.f32 %v69, %v65
    %v71 = vmul.f32 %v70, %v69
    %v72 = vmul.f32 0.5, %v71
    %v73 = vsub.f32 1.5, %v72
    %v74 = vmul.f32 %v69, %v73
    %vm75 = vweird.f32 %v65
    %vm76 = vweird.f32 %v69
    %vm77 = vmor %vm75, %vm76
    %v78 = vsel %vm77, %v69, %v74
    %v79 = vrsqrt.pop %v66
    %v80 = vmul.f32 %v79, %v66
    %v81 = vmul.f32 %v80, %v79
    %v82 = vmul.f32 0.5, %v81
    %v83 = vsub.f32 1.5, %v82
    %v84 = vmul.f32 %v79, %v83
    %vm85 = vweird.f32 %v66
    %vm86 = vweird.f32 %v79
    %vm87 = vmor %vm85, %vm86
    %v88 = vsel %vm87, %v79, %v84
    %v89 = vrsqrt.pop %v67
    %v90 = vmul.f32 %v89, %v67
    %v91 = vmul.f32 %v90, %v89
    %v92 = vmul.f32 0.5, %v91
    %v93 = vsub.f32 1.5, %v92
    %v94 = vmul.f32 %v89, %v93
    %vm95 = vweird.f32 %v67
    %vm96 = vweird.f32 %v89
    %vm97 = vmor %vm95, %vm96
    %v98 = vsel %vm97, %v89, %v94
    %v99 = vrsqrt.pop %v68
    %v100 = vmul.f32 %v99, %v68
    %v101 = vmul.f32 %v100, %v99
    %v102 = vmul.f32 0.5, %v101
    %v103 = vsub.f32 1.5, %v102
    %v104 = vmul.f32 %v99, %v103
    %vm105 = vweird.f32 %v68
    %vm106 = vweird.f32 %v99
    %vm107 = vmor %vm105, %vm106
    %v108 = vsel %vm107, %v99, %v104
    %v109 = vmul.f32 %v61, %v78
    %v110 = vmul.f32 %v62, %v88
    %v111 = vmul.f32 %v63, %v98
    %v112 = vmul.f32 %v64, %v108
    %v113 = vld [vmem:[%s1] sm:$0x1]
    %v114 = vperm.slane %v113, 0
    %v115 = vmul.f32 %v109, %v114
    %v116 = vmul.f32 %v110, %v114
    %v117 = vmul.f32 %v111, %v114
    %v118 = vmul.f32 %v112, %v114
    %v119 = vld [vmem:[%s1 + $0x1] sm:$0x1]
    %v120 = vperm.slane %v119, 0
    %v121 = vadd.f32 %v115, %v120
    %v122 = vadd.f32 %v116, %v120
    %v123 = vadd.f32 %v117, %v120
    %v124 = vadd.f32 %v118, %v120
    %v125 = vld [vmem:[%s2] sm:$0xff]
    %v126 = vld [vmem:[%s2 + $0x8] sm:$0xff]
    %v127 = vld [vmem:[%s2 + $0x10] sm:$0xff]
    %v128 = vld [vmem:[%s2 + $0x18] sm:$0xff]
    %v129 = vld [vmem:[%s2 + $0x20] sm:$0xff]
    %v130 = vld [vmem:[%s2 + $0x28] sm:$0xff]
    %v131 = vld [vmem:[%s2 + $0x30] sm:$0xff]
    %v132 = vld [vmem:[%s2 + $0x38] sm:$0xff]
    %v133 = vld [vmem:[%s2 + $0x40] sm:$0xff]
    %v134 = vld [vmem:[%s2 + $0x48] sm:$0xff]
    %v135 = vld [vmem:[%s2 + $0x50] sm:$0xff]
    %v136 = vld [vmem:[%s2 + $0x58] sm:$0xff]
    %v137 = vld [vmem:[%s2 + $0x60] sm:$0xff]
    %v138 = vld [vmem:[%s2 + $0x68] sm:$0xff]
    %v139 = vld [vmem:[%s2 + $0x70] sm:$0xff]
    %v140 = vld [vmem:[%s2 + $0x78] sm:$0xff]
    %v141 = vld [vmem:[%s1 + $0x2] sm:$0x1]
    %v142 = vperm.slane %v141, 0
    %143 = vmatpush.msra.mxu0 %v140
    %144 = vmatpush.msra.mxu0 %v139
    %145 = vmatpush.msra.mxu0 %v138
    %146 = vmatpush.msra.mxu0 %v137
    %147 = vmatpush.msra.mxu0 %v136
    %148 = vmatpush.msra.mxu0 %v135
    %149 = vmatpush.msra.mxu0 %v134
    %150 = vmatpush.msra.mxu0 %v133
    %151 = vmatpush.msra.mxu0 %v132
    %152 = vmatpush.msra.mxu0 %v131
    %153 = vmatpush.msra.mxu0 %v130
    %154 = vmatpush.msra.mxu0 %v129
    %155 = vmatpush.msra.mxu0 %v128
    %156 = vmatpush.msra.mxu0 %v127
    %157 = vmatpush.msra.mxu0 %v126
    %158 = vmatpush.msra.mxu0 %v125
    %159 = vmatmul.f32.gmra.mxu0 %v121
    %v160 = vpop.f32.mrf.mxu0
    %v161 = vadd.f32 %v142, %v160
    %162 = vmatmul.f32.gmra.mxu0 %v122
    %v163 = vpop.f32.mrf.mxu0
    %v164 = vadd.f32 %v142, %v163
    %165 = vmatmul.f32.gmra.mxu0 %v123
    %v166 = vpop.f32.mrf.mxu0
    %v167 = vadd.f32 %v142, %v166
    %168 = vmatmul.f32.gmra.mxu0 %v124
    %v169 = vpop.f32.mrf.mxu0
    %v170 = vadd.f32 %v142, %v169
    %171 = vdwg.mxu0
    %v172 = vld [vmem:[%s1 + $0x3] sm:$0x1]
    %v173 = vld [vmem:[%s1 + $0x4] sm:$0x1]
    %174 = vadd.xlane.f32.xlu0 %v161
    %v175 = vpop.xlane.xlu0 %174
    %176 = vadd.xlane.f32.xlu0 %v164
    %v177 = vpop.xlane.xlu0 %176
    %178 = vadd.xlane.f32.xlu0 %v167
    %v179 = vpop.xlane.xlu0 %178
    %180 = vadd.xlane.f32.xlu0 %v170
    %v181 = vpop.xlane.xlu0 %180
    %v182 = vrcp.pop 128.0
    %v183 = vmul.f32 128.0, %v182
    %v184 = vsub.f32 1.0, %v183
    %v185 = vmul.f32 %v182, %v184
    %v186 = vadd.f32 %v182, %v185
    %vm187 = vweird.f32 %v182
    %v188 = vsel %vm187, %v182, %v186
    %v189 = vmul.f32 %v175, %v188
    %v190 = vmul.f32 %v177, %v188
    %v191 = vmul.f32 %v179, %v188
    %v192 = vmul.f32 %v181, %v188
    %v193 = vsub.f32 %v161, %v189
    %v194 = vsub.f32 %v164, %v190
    %v195 = vsub.f32 %v167, %v191
    %v196 = vsub.f32 %v170, %v192
    %v197 = vmul.f32 %v193, %v193
    %v198 = vmul.f32 %v194, %v194
    %v199 = vmul.f32 %v195, %v195
    %v200 = vmul.f32 %v196, %v196
    %201 = vadd.xlane.f32.xlu0 %v197
    %v202 = vpop.xlane.xlu0 %201
    %203 = vadd.xlane.f32.xlu0 %v198
    %v204 = vpop.xlane.xlu0 %203
    %205 = vadd.xlane.f32.xlu0 %v199
    %v206 = vpop.xlane.xlu0 %205
    %207 = vadd.xlane.f32.xlu0 %v200
    %v208 = vpop.xlane.xlu0 %207
    %v209 = vmul.f32 %v202, %v188
    %v210 = vmul.f32 %v204, %v188
    %v211 = vmul.f32 %v206, %v188
    %v212 = vmul.f32 %v208, %v188
    %v213 = vadd.f32 %v209, 1e-05
    %v214 = vadd.f32 %v210, 1e-05
    %v215 = vadd.f32 %v211, 1e-05
    %v216 = vadd.f32 %v212, 1e-05
    %v217 = vrsqrt.pop %v213
    %v218 = vmul.f32 %v217, %v213
    %v219 = vmul.f32 %v218, %v217
    %v220 = vmul.f32 0.5, %v219
    %v221 = vsub.f32 1.5, %v220
    %v222 = vmul.f32 %v217, %v221
    %vm223 = vweird.f32 %v213
    %vm224 = vweird.f32 %v217
    %vm225 = vmor %vm223, %vm224
    %v226 = vsel %vm225, %v217, %v222
    %v227 = vrsqrt.pop %v214
    %v228 = vmul.f32 %v227, %v214
    %v229 = vmul.f32 %v228, %v227
    %v230 = vmul.f32 0.5, %v229
    %v231 = vsub.f32 1.5, %v230
    %v232 = vmul.f32 %v227, %v231
    %vm233 = vweird.f32 %v214
    %vm234 = vweird.f32 %v227
    %vm235 = vmor %vm233, %vm234
    %v236 = vsel %vm235, %v227, %v232
    %v237 = vrsqrt.pop %v215
    %v238 = vmul.f32 %v237, %v215
    %v239 = vmul.f32 %v238, %v237
    %v240 = vmul.f32 0.5, %v239
    %v241 = vsub.f32 1.5, %v240
    %v242 = vmul.f32 %v237, %v241
    %vm243 = vweird.f32 %v215
    %vm244 = vweird.f32 %v237
    %vm245 = vmor %vm243, %vm244
    %v246 = vsel %vm245, %v237, %v242
    %v247 = vrsqrt.pop %v216
    %v248 = vmul.f32 %v247, %v216
    %v249 = vmul.f32 %v248, %v247
    %v250 = vmul.f32 0.5, %v249
    %v251 = vsub.f32 1.5, %v250
    %v252 = vmul.f32 %v247, %v251
    %vm253 = vweird.f32 %v216
    %vm254 = vweird.f32 %v247
    %vm255 = vmor %vm253, %vm254
    %v256 = vsel %vm255, %v247, %v252
    %v257 = vmul.f32 %v193, %v226
    %v258 = vmul.f32 %v194, %v236
    %v259 = vmul.f32 %v195, %v246
    %v260 = vmul.f32 %v196, %v256
    %v261 = vperm.slane %v172, 0
    %v262 = vmul.f32 %v257, %v261
    %v263 = vmul.f32 %v258, %v261
    %v264 = vmul.f32 %v259, %v261
    %v265 = vmul.f32 %v260, %v261
    %v266 = vperm.slane %v173, 0
    %v267 = vadd.f32 %v262, %v266
    %v268 = vadd.f32 %v263, %v266
    %v269 = vadd.f32 %v264, %v266
    %v270 = vadd.f32 %v265, %v266
    %v271 = vld [vmem:[%s1 + $0xc] sm:$0xff]
    %v272 = vld [vmem:[%s1 + $0x14] sm:$0xff]
    %v273 = vld [vmem:[%s1 + $0x1c] sm:$0xff]
    %v274 = vld [vmem:[%s1 + $0x24] sm:$0xff]
    %v275 = vadd.f32 %v267, %v271
    %v276 = vadd.f32 %v268, %v272
    %v277 = vadd.f32 %v269, %v273
    %v278 = vadd.f32 %v270, %v274
    %v279 = vld [vmem:[%s1 + $0x2c] sm:$0xff]
    %v280 = vld [vmem:[%s1 + $0x34] sm:$0xff]
    %v281 = vld [vmem:[%s1 + $0x3c] sm:$0xff]
    %v282 = vld [vmem:[%s1 + $0x44] sm:$0xff]
    %v283 = vld [vmem:[%s1 + $0x6] sm:$0x1]
    %v284 = vld [vmem:[%s1 + $0x8] sm:$0x1]
    %285 = vadd.xlane.f32.xlu0 %v275
    %v286 = vpop.xlane.xlu0 %285
    %287 = vadd.xlane.f32.xlu0 %v276
    %v288 = vpop.xlane.xlu0 %287
    %289 = vadd.xlane.f32.xlu0 %v277
    %v290 = vpop.xlane.xlu0 %289
    %291 = vadd.xlane.f32.xlu0 %v278
    %v292 = vpop.xlane.xlu0 %291
    %v293 = vmul.f32 %v286, %v188
    %v294 = vmul.f32 %v288, %v188
    %v295 = vmul.f32 %v290, %v188
    %v296 = vmul.f32 %v292, %v188
    %v297 = vsub.f32 %v275, %v293
    %v298 = vsub.f32 %v276, %v294
    %v299 = vsub.f32 %v277, %v295
    %v300 = vsub.f32 %v278, %v296
    %v301 = vmul.f32 %v297, %v297
    %v302 = vmul.f32 %v298, %v298
    %v303 = vmul.f32 %v299, %v299
    %v304 = vmul.f32 %v300, %v300
    %305 = vadd.xlane.f32.xlu0 %v301
    %v306 = vpop.xlane.xlu0 %305
    %307 = vadd.xlane.f32.xlu0 %v302
    %v308 = vpop.xlane.xlu0 %307
    %309 = vadd.xlane.f32.xlu0 %v303
    %v310 = vpop.xlane.xlu0 %309
    %311 = vadd.xlane.f32.xlu0 %v304
    %v312 = vpop.xlane.xlu0 %311
    %v313 = vmul.f32 %v306, %v188
    %v314 = vmul.f32 %v308, %v188
    %v315 = vmul.f32 %v310, %v188
    %v316 = vmul.f32 %v312, %v188
    %v317 = vadd.f32 %v313, 1e-05
    %v318 = vadd.f32 %v314, 1e-05
    %v319 = vadd.f32 %v315, 1e-05
    %v320 = vadd.f32 %v316, 1e-05
    %v321 = vrsqrt.pop %v317
    %v322 = vmul.f32 %v321, %v317
    %v323 = vmul.f32 %v322, %v321
    %v324 = vmul.f32 0.5, %v323
    %v325 = vsub.f32 1.5, %v324
    %v326 = vmul.f32 %v321, %v325
    %vm327 = vweird.f32 %v317
    %vm328 = vweird.f32 %v321
    %vm329 = vmor %vm327, %vm328
    %v330 = vsel %vm329, %v321, %v326
    %v331 = vrsqrt.pop %v318
    %v332 = vmul.f32 %v331, %v318
    %v333 = vmul.f32 %v332, %v331
    %v334 = vmul.f32 0.5, %v333
    %v335 = vsub.f32 1.5, %v334
    %v336 = vmul.f32 %v331, %v335
    %vm337 = vweird.f32 %v318
    %vm338 = vweird.f32 %v331
    %vm339 = vmor %vm337, %vm338
    %v340 = vsel %vm339, %v331, %v336
    %v341 = vrsqrt.pop %v319
    %v342 = vmul.f32 %v341, %v319
    %v343 = vmul.f32 %v342, %v341
    %v344 = vmul.f32 0.5, %v343
    %v345 = vsub.f32 1.5, %v344
    %v346 = vmul.f32 %v341, %v345
    %vm347 = vweird.f32 %v319
    %vm348 = vweird.f32 %v341
    %vm349 = vmor %vm347, %vm348
    %v350 = vsel %vm349, %v341, %v346
    %v351 = vrsqrt.pop %v320
    %v352 = vmul.f32 %v351, %v320
    %v353 = vmul.f32 %v352, %v351
    %v354 = vmul.f32 0.5, %v353
    %v355 = vsub.f32 1.5, %v354
    %v356 = vmul.f32 %v351, %v355
    %vm357 = vweird.f32 %v320
    %vm358 = vweird.f32 %v351
    %vm359 = vmor %vm357, %vm358
    %v360 = vsel %vm359, %v351, %v356
    %v361 = vmul.f32 %v297, %v330
    %v362 = vmul.f32 %v298, %v340
    %v363 = vmul.f32 %v299, %v350
    %v364 = vmul.f32 %v300, %v360
    %v365 = vperm.slane %v283, 0
    %v366 = vmul.f32 %v361, %v365
    %v367 = vmul.f32 %v362, %v365
    %v368 = vmul.f32 %v363, %v365
    %v369 = vmul.f32 %v364, %v365
    %v370 = vperm.slane %v284, 0
    %v371 = vadd.f32 %v366, %v370
    %v372 = vadd.f32 %v367, %v370
    %v373 = vadd.f32 %v368, %v370
    %v374 = vadd.f32 %v369, %v370
    %v375 = vld [vmem:[%s3] sm:$0xff]
    %v376 = vld [vmem:[%s3 + $0x8] sm:$0xff]
    %v377 = vld [vmem:[%s3 + $0x10] sm:$0xff]
    %v378 = vld [vmem:[%s3 + $0x18] sm:$0xff]
    %v379 = vld [vmem:[%s3 + $0x20] sm:$0xff]
    %v380 = vld [vmem:[%s3 + $0x28] sm:$0xff]
    %v381 = vld [vmem:[%s3 + $0x30] sm:$0xff]
    %v382 = vld [vmem:[%s3 + $0x38] sm:$0xff]
    %v383 = vld [vmem:[%s3 + $0x40] sm:$0xff]
    %v384 = vld [vmem:[%s3 + $0x48] sm:$0xff]
    %v385 = vld [vmem:[%s3 + $0x50] sm:$0xff]
    %v386 = vld [vmem:[%s3 + $0x58] sm:$0xff]
    %v387 = vld [vmem:[%s3 + $0x60] sm:$0xff]
    %v388 = vld [vmem:[%s3 + $0x68] sm:$0xff]
    %v389 = vld [vmem:[%s3 + $0x70] sm:$0xff]
    %v390 = vld [vmem:[%s3 + $0x78] sm:$0xff]
    %v391 = vld [vmem:[%s3 + $0x80] sm:$0xff]
    %v392 = vld [vmem:[%s3 + $0x88] sm:$0xff]
    %v393 = vld [vmem:[%s3 + $0x90] sm:$0xff]
    %v394 = vld [vmem:[%s3 + $0x98] sm:$0xff]
    %v395 = vld [vmem:[%s3 + $0xa0] sm:$0xff]
    %v396 = vld [vmem:[%s3 + $0xa8] sm:$0xff]
    %v397 = vld [vmem:[%s3 + $0xb0] sm:$0xff]
    %v398 = vld [vmem:[%s3 + $0xb8] sm:$0xff]
    %v399 = vld [vmem:[%s3 + $0xc0] sm:$0xff]
    %v400 = vld [vmem:[%s3 + $0xc8] sm:$0xff]
    %v401 = vld [vmem:[%s3 + $0xd0] sm:$0xff]
    %v402 = vld [vmem:[%s3 + $0xd8] sm:$0xff]
    %v403 = vld [vmem:[%s3 + $0xe0] sm:$0xff]
    %v404 = vld [vmem:[%s3 + $0xe8] sm:$0xff]
    %v405 = vld [vmem:[%s3 + $0xf0] sm:$0xff]
    %v406 = vld [vmem:[%s3 + $0xf8] sm:$0xff]
    %v407 = vld [vmem:[%s3 + $0x100] sm:$0xff]
    %v408 = vld [vmem:[%s3 + $0x108] sm:$0xff]
    %v409 = vld [vmem:[%s3 + $0x110] sm:$0xff]
    %v410 = vld [vmem:[%s3 + $0x118] sm:$0xff]
    %v411 = vld [vmem:[%s3 + $0x120] sm:$0xff]
    %v412 = vld [vmem:[%s3 + $0x128] sm:$0xff]
    %v413 = vld [vmem:[%s3 + $0x130] sm:$0xff]
    %v414 = vld [vmem:[%s3 + $0x138] sm:$0xff]
    %v415 = vld [vmem:[%s3 + $0x140] sm:$0xff]
    %v416 = vld [vmem:[%s3 + $0x148] sm:$0xff]
    %v417 = vld [vmem:[%s3 + $0x150] sm:$0xff]
    %v418 = vld [vmem:[%s3 + $0x158] sm:$0xff]
    %v419 = vld [vmem:[%s3 + $0x160] sm:$0xff]
    %v420 = vld [vmem:[%s3 + $0x168] sm:$0xff]
    %v421 = vld [vmem:[%s3 + $0x170] sm:$0xff]
    %v422 = vld [vmem:[%s3 + $0x178] sm:$0xff]
    %423 = vmatpush.msra.mxu0 %v420
    %424 = vmatpush.msra.mxu0 %v417
    %425 = vmatpush.msra.mxu0 %v414
    %426 = vmatpush.msra.mxu0 %v411
    %427 = vmatpush.msra.mxu0 %v408
    %428 = vmatpush.msra.mxu0 %v405
    %429 = vmatpush.msra.mxu0 %v402
    %430 = vmatpush.msra.mxu0 %v399
    %431 = vmatpush.msra.mxu0 %v396
    %432 = vmatpush.msra.mxu0 %v393
    %433 = vmatpush.msra.mxu0 %v390
    %434 = vmatpush.msra.mxu0 %v387
    %435 = vmatpush.msra.mxu0 %v384
    %436 = vmatpush.msra.mxu0 %v381
    %437 = vmatpush.msra.mxu0 %v378
    %438 = vmatpush.msra.mxu0 %v375
    %439 = vmatmul.f32.gmra.mxu0 %v371
    %v440 = vpop.f32.mrf.mxu0
    %v441 = vadd.f32 0.0, %v440
    %442 = vmatmul.f32.gmra.mxu0 %v372
    %v443 = vpop.f32.mrf.mxu0
    %v444 = vadd.f32 0.0, %v443
    %445 = vmatmul.f32.gmra.mxu0 %v373
    %v446 = vpop.f32.mrf.mxu0
    %v447 = vadd.f32 0.0, %v446
    %448 = vmatmul.f32.gmra.mxu0 %v374
    %v449 = vpop.f32.mrf.mxu0
    %v450 = vadd.f32 0.0, %v449
    %451 = vdwg.mxu0
    %452 = vmatpush.msra.mxu0 %v421
    %453 = vmatpush.msra.mxu0 %v418
    %454 = vmatpush.msra.mxu0 %v415
    %455 = vmatpush.msra.mxu0 %v412
    %456 = vmatpush.msra.mxu0 %v409
    %457 = vmatpush.msra.mxu0 %v406
    %458 = vmatpush.msra.mxu0 %v403
    %459 = vmatpush.msra.mxu0 %v400
    %460 = vmatpush.msra.mxu0 %v397
    %461 = vmatpush.msra.mxu0 %v394
    %462 = vmatpush.msra.mxu0 %v391
    %463 = vmatpush.msra.mxu0 %v388
    %464 = vmatpush.msra.mxu0 %v385
    %465 = vmatpush.msra.mxu0 %v382
    %466 = vmatpush.msra.mxu0 %v379
    %467 = vmatpush.msra.mxu0 %v376
    %468 = vmatmul.f32.gmra.mxu0 %v371
    %v469 = vpop.f32.mrf.mxu0
    %v470 = vadd.f32 0.0, %v469
    %471 = vmatmul.f32.gmra.mxu0 %v372
    %v472 = vpop.f32.mrf.mxu0
    %v473 = vadd.f32 0.0, %v472
    %474 = vmatmul.f32.gmra.mxu0 %v373
    %v475 = vpop.f32.mrf.mxu0
    %v476 = vadd.f32 0.0, %v475
    %477 = vmatmul.f32.gmra.mxu0 %v374
    %v478 = vpop.f32.mrf.mxu0
    %v479 = vadd.f32 0.0, %v478
    %480 = vdwg.mxu0
    %481 = vmatpush.msra.mxu0 %v422
    %482 = vmatpush.msra.mxu0 %v419
    %483 = vmatpush.msra.mxu0 %v416
    %484 = vmatpush.msra.mxu0 %v413
    %485 = vmatpush.msra.mxu0 %v410
    %486 = vmatpush.msra.mxu0 %v407
    %487 = vmatpush.msra.mxu0 %v404
    %488 = vmatpush.msra.mxu0 %v401
    %489 = vmatpush.msra.mxu0 %v398
    %490 = vmatpush.msra.mxu0 %v395
    %491 = vmatpush.msra.mxu0 %v392
    %492 = vmatpush.msra.mxu0 %v389
    %493 = vmatpush.msra.mxu0 %v386
    %494 = vmatpush.msra.mxu0 %v383
    %495 = vmatpush.msra.mxu0 %v380
    %496 = vmatpush.msra.mxu0 %v377
    %497 = vmatmul.f32.gmra.mxu0 %v371
    %v498 = vpop.f32.mrf.mxu0
    %v499 = vadd.f32 0.0, %v498
    %500 = vmatmul.f32.gmra.mxu0 %v372
    %v501 = vpop.f32.mrf.mxu0
    %v502 = vadd.f32 0.0, %v501
    %503 = vmatmul.f32.gmra.mxu0 %v373
    %v504 = vpop.f32.mrf.mxu0
    %v505 = vadd.f32 0.0, %v504
    %506 = vmatmul.f32.gmra.mxu0 %v374
    %v507 = vpop.f32.mrf.mxu0
    %v508 = vadd.f32 0.0, %v507
    %509 = vdwg.mxu0
    %510 = vmatpush.xpose.msra.mxu0 0.0
    %511 = vmatpush.xpose.msra.mxu0 0.0
    %512 = vmatpush.xpose.msra.mxu0 0.0
    %513 = vmatpush.xpose.msra.mxu0 0.0
    %514 = vmatpush.xpose.msra.mxu0 0.0
    %515 = vmatpush.xpose.msra.mxu0 0.0
    %516 = vmatpush.xpose.msra.mxu0 0.0
    %517 = vmatpush.xpose.msra.mxu0 0.0
    %518 = vmatpush.xpose.msra.mxu0 0.0
    %519 = vmatpush.xpose.msra.mxu0 0.0
    %520 = vmatpush.xpose.msra.mxu0 0.0
    %521 = vmatpush.xpose.msra.mxu0 0.0
    %522 = vmatpush.xpose.msra.mxu0 %v479
    %523 = vmatpush.xpose.msra.mxu0 %v476
    %524 = vmatpush.xpose.msra.mxu0 %v473
    %525 = vmatpush.xpose.msra.mxu0 %v470
    %526 = vmatmul.f32.gmra.mxu0 %v441
    %v527 = vpop.f32.mrf.mxu0
    %v528 = vadd.f32 %v279, %v527
    %529 = vmatmul.f32.gmra.mxu0 %v444
    %v530 = vpop.f32.mrf.mxu0
    %v531 = vadd.f32 %v280, %v530
    %532 = vmatmul.f32.gmra.mxu0 %v447
    %v533 = vpop.f32.mrf.mxu0
    %v534 = vadd.f32 %v281, %v533
    %535 = vmatmul.f32.gmra.mxu0 %v450
    %v536 = vpop.f32.mrf.mxu0
    %v537 = vadd.f32 %v282, %v536
    %538 = vdwg.mxu0
    %vm539 = vcmask 261120
    %v540 = vsel %vm539, %v528, -inf
    %541 = vmax.xlane.f32.xlu0 %v540
    %v542 = vpop.xlane.xlu0 %541
    %v543 = vsel %vm539, %v531, -inf
    %544 = vmax.xlane.f32.xlu0 %v543
    %v545 = vpop.xlane.xlu0 %544
    %v546 = vsel %vm539, %v534, -inf
    %547 = vmax.xlane.f32.xlu0 %v546
    %v548 = vpop.xlane.xlu0 %547
    %v549 = vsel %vm539, %v537, -inf
    %550 = vmax.xlane.f32.xlu0 %v549
    %v551 = vpop.xlane.xlu0 %550
    %v552 = vsub.f32 %v528, %v542
    %v553 = vsub.f32 %v531, %v545
    %v554 = vsub.f32 %v534, %v548
    %v555 = vsub.f32 %v537, %v551
    %v556 = vmul.f32 %v552, 1.442695
    %v557 = vpow.pop %v556
    %v558 = vmul.f32 %v553, 1.442695
    %v559 = vpow.pop %v558
    %v560 = vmul.f32 %v554, 1.442695
    %v561 = vpow.pop %v560
    %v562 = vmul.f32 %v555, 1.442695
    %v563 = vpow.pop %v562
    %v564 = vsel %vm539, %v557, 0.0
    %565 = vadd.xlane.f32.xlu0 %v564
    %v566 = vpop.xlane.xlu0 %565
    %v567 = vsel %vm539, %v559, 0.0
    %568 = vadd.xlane.f32.xlu0 %v567
    %v569 = vpop.xlane.xlu0 %568
    %v570 = vsel %vm539, %v561, 0.0
    %571 = vadd.xlane.f32.xlu0 %v570
    %v572 = vpop.xlane.xlu0 %571
    %v573 = vsel %vm539, %v563, 0.0
    %574 = vadd.xlane.f32.xlu0 %v573
    %v575 = vpop.xlane.xlu0 %574
    %v576 = vrcp.pop %v566
    %v577 = vmul.f32 %v566, %v576
    %v578 = vsub.f32 1.0, %v577
    %v579 = vmul.f32 %v576, %v578
    %v580 = vadd.f32 %v576, %v579
    %vm581 = vweird.f32 %v566
    %vm582 = vweird.f32 %v576
    %vm583 = vmor %vm581, %vm582
    %v584 = vsel %vm583, %v576, %v580
    %v585 = vand.u32 2147483647, %v566
    %vm586 = vcmp.eq.f32.partialorder %v585, 8.507059e+37
    %v587 = vand.u32 %v566, 2147483648
    %v588 = vor.u32 1.1754944e-38, %v587
    %v589 = vsel %vm586, %v588, %v584
    %v590 = vrcp.pop %v569
    %v591 = vmul.f32 %v569, %v590
    %v592 = vsub.f32 1.0, %v591
    %v593 = vmul.f32 %v590, %v592
    %v594 = vadd.f32 %v590, %v593
    %vm595 = vweird.f32 %v569
    %vm596 = vweird.f32 %v590
    %vm597 = vmor %vm595, %vm596
    %v598 = vsel %vm597, %v590, %v594
    %v599 = vand.u32 2147483647, %v569
    %vm600 = vcmp.eq.f32.partialorder %v599, 8.507059e+37
    %v601 = vand.u32 %v569, 2147483648
    %v602 = vor.u32 1.1754944e-38, %v601
    %v603 = vsel %vm600, %v602, %v598
    %v604 = vrcp.pop %v572
    %v605 = vmul.f32 %v572, %v604
    %v606 = vsub.f32 1.0, %v605
    %v607 = vmul.f32 %v604, %v606
    %v608 = vadd.f32 %v604, %v607
    %vm609 = vweird.f32 %v572
    %vm610 = vweird.f32 %v604
    %vm611 = vmor %vm609, %vm610
    %v612 = vsel %vm611, %v604, %v608
    %v613 = vand.u32 2147483647, %v572
    %vm614 = vcmp.eq.f32.partialorder %v613, 8.507059e+37
    %v615 = vand.u32 %v572, 2147483648
    %v616 = vor.u32 1.1754944e-38, %v615
    %v617 = vsel %vm614, %v616, %v612
    %v618 = vrcp.pop %v575
    %v619 = vmul.f32 %v575, %v618
    %v620 = vsub.f32 1.0, %v619
    %v621 = vmul.f32 %v618, %v620
    %v622 = vadd.f32 %v618, %v621
    %vm623 = vweird.f32 %v575
    %vm624 = vweird.f32 %v618
    %vm625 = vmor %vm623, %vm624
    %v626 = vsel %vm625, %v618, %v622
    %v627 = vand.u32 2147483647, %v575
    %vm628 = vcmp.eq.f32.partialorder %v627, 8.507059e+37
    %v629 = vand.u32 %v575, 2147483648
    %v630 = vor.u32 1.1754944e-38, %v629
    %v631 = vsel %vm628, %v630, %v626
    %v632 = vmul.f32 %v557, %v589
    %v633 = vmul.f32 %v559, %v603
    %v634 = vmul.f32 %v561, %v617
    %v635 = vmul.f32 %v563, %v631
    %v637 = vsel %vm539, %v632, 0
    %v640 = vsel %vm539, %v633, 0
    %v643 = vsel %vm539, %v634, 0
    %v646 = vsel %vm539, %v635, 0
    %648 = vmatpush.msra.mxu0 0.0
    %649 = vmatpush.msra.mxu0 0.0
    %650 = vmatpush.msra.mxu0 0.0
    %651 = vmatpush.msra.mxu0 0.0
    %652 = vmatpush.msra.mxu0 0.0
    %653 = vmatpush.msra.mxu0 0.0
    %654 = vmatpush.msra.mxu0 0.0
    %655 = vmatpush.msra.mxu0 0.0
    %656 = vmatpush.msra.mxu0 0.0
    %657 = vmatpush.msra.mxu0 0.0
    %658 = vmatpush.msra.mxu0 0.0
    %659 = vmatpush.msra.mxu0 0.0
    %660 = vmatpush.msra.mxu0 %v508
    %661 = vmatpush.msra.mxu0 %v505
    %662 = vmatpush.msra.mxu0 %v502
    %663 = vmatpush.msra.mxu0 %v499
    %664 = vmatmul.f32.gmra.mxu0 %v637
    %v665 = vpop.f32.mrf.mxu0
    %v666 = vadd.f32 %v371, %v665
    %667 = vmatmul.f32.gmra.mxu0 %v640
    %v668 = vpop.f32.mrf.mxu0
    %v669 = vadd.f32 %v372, %v668
    %670 = vmatmul.f32.gmra.mxu0 %v643
    %v671 = vpop.f32.mrf.mxu0
    %v672 = vadd.f32 %v373, %v671
    %673 = vmatmul.f32.gmra.mxu0 %v646
    %v674 = vpop.f32.mrf.mxu0
    %v675 = vadd.f32 %v374, %v674
    %676 = vdwg.mxu0
    %v677 = vld [vmem:[%s1 + $0x7] sm:$0x1]
    %v678 = vld [vmem:[%s1 + $0x9] sm:$0x1]
    %679 = vadd.xlane.f32.xlu0 %v666
    %v680 = vpop.xlane.xlu0 %679
    %681 = vadd.xlane.f32.xlu0 %v669
    %v682 = vpop.xlane.xlu0 %681
    %683 = vadd.xlane.f32.xlu0 %v672
    %v684 = vpop.xlane.xlu0 %683
    %685 = vadd.xlane.f32.xlu0 %v675
    %v686 = vpop.xlane.xlu0 %685
    %v687 = vmul.f32 %v680, %v188
    %v688 = vmul.f32 %v682, %v188
    %v689 = vmul.f32 %v684, %v188
    %v690 = vmul.f32 %v686, %v188
    %v691 = vsub.f32 %v666, %v687
    %v692 = vsub.f32 %v669, %v688
    %v693 = vsub.f32 %v672, %v689
    %v694 = vsub.f32 %v675, %v690
    %v695 = vmul.f32 %v691, %v691
    %v696 = vmul.f32 %v692, %v692
    %v697 = vmul.f32 %v693, %v693
    %v698 = vmul.f32 %v694, %v694
    %699 = vadd.xlane.f32.xlu0 %v695
    %v700 = vpop.xlane.xlu0 %699
    %701 = vadd.xlane.f32.xlu0 %v696
    %v702 = vpop.xlane.xlu0 %701
    %703 = vadd.xlane.f32.xlu0 %v697
    %v704 = vpop.xlane.xlu0 %703
    %705 = vadd.xlane.f32.xlu0 %v698
    %v706 = vpop.xlane.xlu0 %705
    %v707 = vmul.f32 %v700, %v188
    %v708 = vmul.f32 %v702, %v188
    %v709 = vmul.f32 %v704, %v188
    %v710 = vmul.f32 %v706, %v188
    %v711 = vadd.f32 %v707, 1e-05
    %v712 = vadd.f32 %v708, 1e-05
    %v713 = vadd.f32 %v709, 1e-05
    %v714 = vadd.f32 %v710, 1e-05
    %v715 = vrsqrt.pop %v711
    %v716 = vmul.f32 %v715, %v711
    %v717 = vmul.f32 %v716, %v715
    %v718 = vmul.f32 0.5, %v717
    %v719 = vsub.f32 1.5, %v718
    %v720 = vmul.f32 %v715, %v719
    %vm721 = vweird.f32 %v711
    %vm722 = vweird.f32 %v715
    %vm723 = vmor %vm721, %vm722
    %v724 = vsel %vm723, %v715, %v720
    %v725 = vrsqrt.pop %v712
    %v726 = vmul.f32 %v725, %v712
    %v727 = vmul.f32 %v726, %v725
    %v728 = vmul.f32 0.5, %v727
    %v729 = vsub.f32 1.5, %v728
    %v730 = vmul.f32 %v725, %v729
    %vm731 = vweird.f32 %v712
    %vm732 = vweird.f32 %v725
    %vm733 = vmor %vm731, %vm732
    %v734 = vsel %vm733, %v725, %v730
    %v735 = vrsqrt.pop %v713
    %v736 = vmul.f32 %v735, %v713
    %v737 = vmul.f32 %v736, %v735
    %v738 = vmul.f32 0.5, %v737
    %v739 = vsub.f32 1.5, %v738
    %v740 = vmul.f32 %v735, %v739
    %vm741 = vweird.f32 %v713
    %vm742 = vweird.f32 %v735
    %vm743 = vmor %vm741, %vm742
    %v744 = vsel %vm743, %v735, %v740
    %v745 = vrsqrt.pop %v714
    %v746 = vmul.f32 %v745, %v714
    %v747 = vmul.f32 %v746, %v745
    %v748 = vmul.f32 0.5, %v747
    %v749 = vsub.f32 1.5, %v748
    %v750 = vmul.f32 %v745, %v749
    %vm751 = vweird.f32 %v714
    %vm752 = vweird.f32 %v745
    %vm753 = vmor %vm751, %vm752
    %v754 = vsel %vm753, %v745, %v750
    %v755 = vmul.f32 %v691, %v724
    %v756 = vmul.f32 %v692, %v734
    %v757 = vmul.f32 %v693, %v744
    %v758 = vmul.f32 %v694, %v754
    %v759 = vperm.slane %v677, 0
    %v760 = vmul.f32 %v755, %v759
    %v761 = vmul.f32 %v756, %v759
    %v762 = vmul.f32 %v757, %v759
    %v763 = vmul.f32 %v758, %v759
    %v764 = vperm.slane %v678, 0
    %v765 = vadd.f32 %v760, %v764
    %v766 = vadd.f32 %v761, %v764
    %v767 = vadd.f32 %v762, %v764
    %v768 = vadd.f32 %v763, %v764
    %s769 = scalar_lea.vmem %s3, 384
    %v770 = vld [vmem:[%s769] sm:$0xff]
    %v771 = vld [vmem:[%s769 + $0x8] sm:$0xff]
    %v772 = vld [vmem:[%s769 + $0x10] sm:$0xff]
    %v773 = vld [vmem:[%s769 + $0x18] sm:$0xff]
    %v774 = vld [vmem:[%s769 + $0x20] sm:$0xff]
    %v775 = vld [vmem:[%s769 + $0x28] sm:$0xff]
    %v776 = vld [vmem:[%s769 + $0x30] sm:$0xff]
    %v777 = vld [vmem:[%s769 + $0x38] sm:$0xff]
    %v778 = vld [vmem:[%s769 + $0x40] sm:$0xff]
    %v779 = vld [vmem:[%s769 + $0x48] sm:$0xff]
    %v780 = vld [vmem:[%s769 + $0x50] sm:$0xff]
    %v781 = vld [vmem:[%s769 + $0x58] sm:$0xff]
    %v782 = vld [vmem:[%s769 + $0x60] sm:$0xff]
    %v783 = vld [vmem:[%s769 + $0x68] sm:$0xff]
    %v784 = vld [vmem:[%s769 + $0x70] sm:$0xff]
    %v785 = vld [vmem:[%s769 + $0x78] sm:$0xff]
    %v786 = vld [vmem:[%s769 + $0x80] sm:$0xff]
    %v787 = vld [vmem:[%s769 + $0x88] sm:$0xff]
    %v788 = vld [vmem:[%s769 + $0x90] sm:$0xff]
    %v789 = vld [vmem:[%s769 + $0x98] sm:$0xff]
    %v790 = vld [vmem:[%s769 + $0xa0] sm:$0xff]
    %v791 = vld [vmem:[%s769 + $0xa8] sm:$0xff]
    %v792 = vld [vmem:[%s769 + $0xb0] sm:$0xff]
    %v793 = vld [vmem:[%s769 + $0xb8] sm:$0xff]
    %v794 = vld [vmem:[%s769 + $0xc0] sm:$0xff]
    %v795 = vld [vmem:[%s769 + $0xc8] sm:$0xff]
    %v796 = vld [vmem:[%s769 + $0xd0] sm:$0xff]
    %v797 = vld [vmem:[%s769 + $0xd8] sm:$0xff]
    %v798 = vld [vmem:[%s769 + $0xe0] sm:$0xff]
    %v799 = vld [vmem:[%s769 + $0xe8] sm:$0xff]
    %v800 = vld [vmem:[%s769 + $0xf0] sm:$0xff]
    %v801 = vld [vmem:[%s769 + $0xf8] sm:$0xff]
    %v802 = vld [vmem:[%s769 + $0x100] sm:$0xff]
    %v803 = vld [vmem:[%s769 + $0x108] sm:$0xff]
    %v804 = vld [vmem:[%s769 + $0x110] sm:$0xff]
    %v805 = vld [vmem:[%s769 + $0x118] sm:$0xff]
    %v806 = vld [vmem:[%s769 + $0x120] sm:$0xff]
    %v807 = vld [vmem:[%s769 + $0x128] sm:$0xff]
    %v808 = vld [vmem:[%s769 + $0x130] sm:$0xff]
    %v809 = vld [vmem:[%s769 + $0x138] sm:$0xff]
    %v810 = vld [vmem:[%s769 + $0x140] sm:$0xff]
    %v811 = vld [vmem:[%s769 + $0x148] sm:$0xff]
    %v812 = vld [vmem:[%s769 + $0x150] sm:$0xff]
    %v813 = vld [vmem:[%s769 + $0x158] sm:$0xff]
    %v814 = vld [vmem:[%s769 + $0x160] sm:$0xff]
    %v815 = vld [vmem:[%s769 + $0x168] sm:$0xff]
    %v816 = vld [vmem:[%s769 + $0x170] sm:$0xff]
    %v817 = vld [vmem:[%s769 + $0x178] sm:$0xff]
    %818 = vmatpush.msra.mxu0 %v815
    %819 = vmatpush.msra.mxu0 %v812
    %820 = vmatpush.msra.mxu0 %v809
    %821 = vmatpush.msra.mxu0 %v806
    %822 = vmatpush.msra.mxu0 %v803
    %823 = vmatpush.msra.mxu0 %v800
    %824 = vmatpush.msra.mxu0 %v797
    %825 = vmatpush.msra.mxu0 %v794
    %826 = vmatpush.msra.mxu0 %v791
    %827 = vmatpush.msra.mxu0 %v788
    %828 = vmatpush.msra.mxu0 %v785
    %829 = vmatpush.msra.mxu0 %v782
    %830 = vmatpush.msra.mxu0 %v779
    %831 = vmatpush.msra.mxu0 %v776
    %832 = vmatpush.msra.mxu0 %v773
    %833 = vmatpush.msra.mxu0 %v770
    %834 = vmatmul.f32.gmra.mxu0 %v765
    %v835 = vpop.f32.mrf.mxu0
    %v836 = vadd.f32 0.0, %v835
    %837 = vmatmul.f32.gmra.mxu0 %v766
    %v838 = vpop.f32.mrf.mxu0
    %v839 = vadd.f32 0.0, %v838
    %840 = vmatmul.f32.gmra.mxu0 %v767
    %v841 = vpop.f32.mrf.mxu0
    %v842 = vadd.f32 0.0, %v841
    %843 = vmatmul.f32.gmra.mxu0 %v768
    %v844 = vpop.f32.mrf.mxu0
    %v845 = vadd.f32 0.0, %v844
    %846 = vdwg.mxu0
    %847 = vmatpush.msra.mxu0 %v816
    %848 = vmatpush.msra.mxu0 %v813
    %849 = vmatpush.msra.mxu0 %v810
    %850 = vmatpush.msra.mxu0 %v807
    %851 = vmatpush.msra.mxu0 %v804
    %852 = vmatpush.msra.mxu0 %v801
    %853 = vmatpush.msra.mxu0 %v798
    %854 = vmatpush.msra.mxu0 %v795
    %855 = vmatpush.msra.mxu0 %v792
    %856 = vmatpush.msra.mxu0 %v789
    %857 = vmatpush.msra.mxu0 %v786
    %858 = vmatpush.msra.mxu0 %v783
    %859 = vmatpush.msra.mxu0 %v780
    %860 = vmatpush.msra.mxu0 %v777
    %861 = vmatpush.msra.mxu0 %v774
    %862 = vmatpush.msra.mxu0 %v771
    %863 = vmatmul.f32.gmra.mxu0 %v765
    %v864 = vpop.f32.mrf.mxu0
    %v865 = vadd.f32 0.0, %v864
    %866 = vmatmul.f32.gmra.mxu0 %v766
    %v867 = vpop.f32.mrf.mxu0
    %v868 = vadd.f32 0.0, %v867
    %869 = vmatmul.f32.gmra.mxu0 %v767
    %v870 = vpop.f32.mrf.mxu0
    %v871 = vadd.f32 0.0, %v870
    %872 = vmatmul.f32.gmra.mxu0 %v768
    %v873 = vpop.f32.mrf.mxu0
    %v874 = vadd.f32 0.0, %v873
    %875 = vdwg.mxu0
    %876 = vmatpush.msra.mxu0 %v817
    %877 = vmatpush.msra.mxu0 %v814
    %878 = vmatpush.msra.mxu0 %v811
    %879 = vmatpush.msra.mxu0 %v808
    %880 = vmatpush.msra.mxu0 %v805
    %881 = vmatpush.msra.mxu0 %v802
    %882 = vmatpush.msra.mxu0 %v799
    %883 = vmatpush.msra.mxu0 %v796
    %884 = vmatpush.msra.mxu0 %v793
    %885 = vmatpush.msra.mxu0 %v790
    %886 = vmatpush.msra.mxu0 %v787
    %887 = vmatpush.msra.mxu0 %v784
    %888 = vmatpush.msra.mxu0 %v781
    %889 = vmatpush.msra.mxu0 %v778
    %890 = vmatpush.msra.mxu0 %v775
    %891 = vmatpush.msra.mxu0 %v772
    %892 = vmatmul.f32.gmra.mxu0 %v765
    %v893 = vpop.f32.mrf.mxu0
    %v894 = vadd.f32 0.0, %v893
    %895 = vmatmul.f32.gmra.mxu0 %v766
    %v896 = vpop.f32.mrf.mxu0
    %v897 = vadd.f32 0.0, %v896
    %898 = vmatmul.f32.gmra.mxu0 %v767
    %v899 = vpop.f32.mrf.mxu0
    %v900 = vadd.f32 0.0, %v899
    %901 = vmatmul.f32.gmra.mxu0 %v768
    %v902 = vpop.f32.mrf.mxu0
    %v903 = vadd.f32 0.0, %v902
    %904 = vdwg.mxu0
    %905 = vmatpush.xpose.msra.mxu0 0.0
    %906 = vmatpush.xpose.msra.mxu0 0.0
    %907 = vmatpush.xpose.msra.mxu0 0.0
    %908 = vmatpush.xpose.msra.mxu0 0.0
    %909 = vmatpush.xpose.msra.mxu0 0.0
    %910 = vmatpush.xpose.msra.mxu0 0.0
    %911 = vmatpush.xpose.msra.mxu0 0.0
    %912 = vmatpush.xpose.msra.mxu0 0.0
    %913 = vmatpush.xpose.msra.mxu0 0.0
    %914 = vmatpush.xpose.msra.mxu0 0.0
    %915 = vmatpush.xpose.msra.mxu0 0.0
    %916 = vmatpush.xpose.msra.mxu0 0.0
    %917 = vmatpush.xpose.msra.mxu0 %v874
    %918 = vmatpush.xpose.msra.mxu0 %v871
    %919 = vmatpush.xpose.msra.mxu0 %v868
    %920 = vmatpush.xpose.msra.mxu0 %v865
    %921 = vmatmul.f32.gmra.mxu0 %v836
    %v922 = vpop.f32.mrf.mxu0
    %v923 = vadd.f32 %v279, %v922
    %924 = vmatmul.f32.gmra.mxu0 %v839
    %v925 = vpop.f32.mrf.mxu0
    %v926 = vadd.f32 %v280, %v925
    %927 = vmatmul.f32.gmra.mxu0 %v842
    %v928 = vpop.f32.mrf.mxu0
    %v929 = vadd.f32 %v281, %v928
    %930 = vmatmul.f32.gmra.mxu0 %v845
    %v931 = vpop.f32.mrf.mxu0
    %v932 = vadd.f32 %v282, %v931
    %933 = vdwg.mxu0
    %v934 = vsel %vm539, %v923, -inf
    %935 = vmax.xlane.f32.xlu0 %v934
    %v936 = vpop.xlane.xlu0 %935
    %v937 = vsel %vm539, %v926, -inf
    %938 = vmax.xlane.f32.xlu0 %v937
    %v939 = vpop.xlane.xlu0 %938
    %v940 = vsel %vm539, %v929, -inf
    %941 = vmax.xlane.f32.xlu0 %v940
    %v942 = vpop.xlane.xlu0 %941
    %v943 = vsel %vm539, %v932, -inf
    %944 = vmax.xlane.f32.xlu0 %v943
    %v945 = vpop.xlane.xlu0 %944
    %v946 = vsub.f32 %v923, %v936
    %v947 = vsub.f32 %v926, %v939
    %v948 = vsub.f32 %v929, %v942
    %v949 = vsub.f32 %v932, %v945
    %v950 = vmul.f32 %v946, 1.442695
    %v951 = vpow.pop %v950
    %v952 = vmul.f32 %v947, 1.442695
    %v953 = vpow.pop %v952
    %v954 = vmul.f32 %v948, 1.442695
    %v955 = vpow.pop %v954
    %v956 = vmul.f32 %v949, 1.442695
    %v957 = vpow.pop %v956
    %v958 = vsel %vm539, %v951, 0.0
    %959 = vadd.xlane.f32.xlu0 %v958
    %v960 = vpop.xlane.xlu0 %959
    %v961 = vsel %vm539, %v953, 0.0
    %962 = vadd.xlane.f32.xlu0 %v961
    %v963 = vpop.xlane.xlu0 %962
    %v964 = vsel %vm539, %v955, 0.0
    %965 = vadd.xlane.f32.xlu0 %v964
    %v966 = vpop.xlane.xlu0 %965
    %v967 = vsel %vm539, %v957, 0.0
    %968 = vadd.xlane.f32.xlu0 %v967
    %v969 = vpop.xlane.xlu0 %968
    %v970 = vrcp.pop %v960
    %v971 = vmul.f32 %v960, %v970
    %v972 = vsub.f32 1.0, %v971
    %v973 = vmul.f32 %v970, %v972
    %v974 = vadd.f32 %v970, %v973
    %vm975 = vweird.f32 %v960
    %vm976 = vweird.f32 %v970
    %vm977 = vmor %vm975, %vm976
    %v978 = vsel %vm977, %v970, %v974
    %v979 = vand.u32 2147483647, %v960
    %vm980 = vcmp.eq.f32.partialorder %v979, 8.507059e+37
    %v981 = vand.u32 %v960, 2147483648
    %v982 = vor.u32 1.1754944e-38, %v981
    %v983 = vsel %vm980, %v982, %v978
    %v984 = vrcp.pop %v963
    %v985 = vmul.f32 %v963, %v984
    %v986 = vsub.f32 1.0, %v985
    %v987 = vmul.f32 %v984, %v986
    %v988 = vadd.f32 %v984, %v987
    %vm989 = vweird.f32 %v963
    %vm990 = vweird.f32 %v984
    %vm991 = vmor %vm989, %vm990
    %v992 = vsel %vm991, %v984, %v988
    %v993 = vand.u32 2147483647, %v963
    %vm994 = vcmp.eq.f32.partialorder %v993, 8.507059e+37
    %v995 = vand.u32 %v963, 2147483648
    %v996 = vor.u32 1.1754944e-38, %v995
    %v997 = vsel %vm994, %v996, %v992
    %v998 = vrcp.pop %v966
    %v999 = vmul.f32 %v966, %v998
    %v1000 = vsub.f32 1.0, %v999
    %v1001 = vmul.f32 %v998, %v1000
    %v1002 = vadd.f32 %v998, %v1001
    %vm1003 = vweird.f32 %v966
    %vm1004 = vweird.f32 %v998
    %vm1005 = vmor %vm1003, %vm1004
    %v1006 = vsel %vm1005, %v998, %v1002
    %v1007 = vand.u32 2147483647, %v966
    %vm1008 = vcmp.eq.f32.partialorder %v1007, 8.507059e+37
    %v1009 = vand.u32 %v966, 2147483648
    %v1010 = vor.u32 1.1754944e-38, %v1009
    %v1011 = vsel %vm1008, %v1010, %v1006
    %v1012 = vrcp.pop %v969
    %v1013 = vmul.f32 %v969, %v1012
    %v1014 = vsub.f32 1.0, %v1013
    %v1015 = vmul.f32 %v1012, %v1014
    %v1016 = vadd.f32 %v1012, %v1015
    %vm1017 = vweird.f32 %v969
    %vm1018 = vweird.f32 %v1012
    %vm1019 = vmor %vm1017, %vm1018
    %v1020 = vsel %vm1019, %v1012, %v1016
    %v1021 = vand.u32 2147483647, %v969
    %vm1022 = vcmp.eq.f32.partialorder %v1021, 8.507059e+37
    %v1023 = vand.u32 %v969, 2147483648
    %v1024 = vor.u32 1.1754944e-38, %v1023
    %v1025 = vsel %vm1022, %v1024, %v1020
    %v1026 = vmul.f32 %v951, %v983
    %v1027 = vmul.f32 %v953, %v997
    %v1028 = vmul.f32 %v955, %v1011
    %v1029 = vmul.f32 %v957, %v1025
    %v1031 = vsel %vm539, %v1026, 0
    %v1034 = vsel %vm539, %v1027, 0
    %v1037 = vsel %vm539, %v1028, 0
    %v1040 = vsel %vm539, %v1029, 0
    %1042 = vmatpush.msra.mxu0 0.0
    %1043 = vmatpush.msra.mxu0 0.0
    %1044 = vmatpush.msra.mxu0 0.0
    %1045 = vmatpush.msra.mxu0 0.0
    %1046 = vmatpush.msra.mxu0 0.0
    %1047 = vmatpush.msra.mxu0 0.0
    %1048 = vmatpush.msra.mxu0 0.0
    %1049 = vmatpush.msra.mxu0 0.0
    %1050 = vmatpush.msra.mxu0 0.0
    %1051 = vmatpush.msra.mxu0 0.0
    %1052 = vmatpush.msra.mxu0 0.0
    %1053 = vmatpush.msra.mxu0 0.0
    %1054 = vmatpush.msra.mxu0 %v903
    %1055 = vmatpush.msra.mxu0 %v900
    %1056 = vmatpush.msra.mxu0 %v897
    %1057 = vmatpush.msra.mxu0 %v894
    %1058 = vmatmul.f32.gmra.mxu0 %v1031
    %v1059 = vpop.f32.mrf.mxu0
    %v1060 = vadd.f32 %v765, %v1059
    %1061 = vmatmul.f32.gmra.mxu0 %v1034
    %v1062 = vpop.f32.mrf.mxu0
    %v1063 = vadd.f32 %v766, %v1062
    %1064 = vmatmul.f32.gmra.mxu0 %v1037
    %v1065 = vpop.f32.mrf.mxu0
    %v1066 = vadd.f32 %v767, %v1065
    %1067 = vmatmul.f32.gmra.mxu0 %v1040
    %v1068 = vpop.f32.mrf.mxu0
    %v1069 = vadd.f32 %v768, %v1068
    %1070 = vdwg.mxu0
    %v1071 = vld [vmem:[%s1 + $0xa] sm:$0x3]
    %v1073 = vsel %vm539, %v1071, 0
    %1075 = vmatpush.msra.mxu0 0.0
    %1076 = vmatpush.msra.mxu0 0.0
    %1077 = vmatpush.msra.mxu0 0.0
    %1078 = vmatpush.msra.mxu0 0.0
    %1079 = vmatpush.msra.mxu0 0.0
    %1080 = vmatpush.msra.mxu0 0.0
    %1081 = vmatpush.msra.mxu0 0.0
    %1082 = vmatpush.msra.mxu0 0.0
    %1083 = vmatpush.msra.mxu0 0.0
    %1084 = vmatpush.msra.mxu0 0.0
    %1085 = vmatpush.msra.mxu0 0.0
    %1086 = vmatpush.msra.mxu0 0.0
    %1087 = vmatpush.msra.mxu0 %v1069
    %1088 = vmatpush.msra.mxu0 %v1066
    %1089 = vmatpush.msra.mxu0 %v1063
    %1090 = vmatpush.msra.mxu0 %v1060
    %1091 = vmatmul.f32.gmra.mxu0 %v1073
    %v1092 = vpop.f32.mrf.mxu0
    %v1093 = vadd.f32 0.0, %v1092
    %1094 = vdwg.mxu0
    %v1095 = vld [vmem:[%s4] sm:$0xff]
    %v1096 = vld [vmem:[%s4 + $0x8] sm:$0xff]
    %v1097 = vld [vmem:[%s4 + $0x10] sm:$0xff]
    %v1098 = vld [vmem:[%s4 + $0x18] sm:$0xff]
    %v1099 = vld [vmem:[%s4 + $0x20] sm:$0xff]
    %v1100 = vld [vmem:[%s4 + $0x28] sm:$0xff]
    %v1101 = vld [vmem:[%s4 + $0x30] sm:$0xff]
    %v1102 = vld [vmem:[%s4 + $0x38] sm:$0xff]
    %v1103 = vld [vmem:[%s4 + $0x40] sm:$0xff]
    %v1104 = vld [vmem:[%s4 + $0x48] sm:$0xff]
    %v1105 = vld [vmem:[%s4 + $0x50] sm:$0xff]
    %v1106 = vld [vmem:[%s4 + $0x58] sm:$0xff]
    %v1107 = vld [vmem:[%s4 + $0x60] sm:$0xff]
    %v1108 = vld [vmem:[%s4 + $0x68] sm:$0xff]
    %v1109 = vld [vmem:[%s4 + $0x70] sm:$0xff]
    %v1110 = vld [vmem:[%s4 + $0x78] sm:$0xff]
    %v1111 = vld [vmem:[%s1 + $0x5] sm:$0x1]
    %v1112 = vperm.slane %v1111, 0
    %1113 = vmatpush.msra.mxu0 %v1110
    %1114 = vmatpush.msra.mxu0 %v1109
    %1115 = vmatpush.msra.mxu0 %v1108
    %1116 = vmatpush.msra.mxu0 %v1107
    %1117 = vmatpush.msra.mxu0 %v1106
    %1118 = vmatpush.msra.mxu0 %v1105
    %1119 = vmatpush.msra.mxu0 %v1104
    %1120 = vmatpush.msra.mxu0 %v1103
    %1121 = vmatpush.msra.mxu0 %v1102
    %1122 = vmatpush.msra.mxu0 %v1101
    %1123 = vmatpush.msra.mxu0 %v1100
    %1124 = vmatpush.msra.mxu0 %v1099
    %1125 = vmatpush.msra.mxu0 %v1098
    %1126 = vmatpush.msra.mxu0 %v1097
    %1127 = vmatpush.msra.mxu0 %v1096
    %1128 = vmatpush.msra.mxu0 %v1095
    %1129 = vmatmul.f32.gmra.mxu0 %v1093
    %v1130 = vpop.f32.mrf.mxu0
    %v1131 = vadd.f32 %v1112, %v1130
    %1132 = vdwg.mxu0
    %1133 = vst [vmem:[#allocation2] sm:$0x3] %v1131
    // Predicated region
    $region22: #{simple_transformer_forward.1} parent=1 // pred_check
      _
    $region23: #{simple_transformer_forward.1} parent=1 // pred_check_branch
      %1135 = sbr.rel (0) target = $region25
    $region24: #{simple_transformer_forward.1} parent=1 // pred_region
      %1137 = vsyncadd [#allocation3], 0
      %s1139 = sshll.u32 [#allocation2], 4
      %s1140 = int_to_ptr.vmem [resolvable:$true] %s1139
      %s1141 = sshll.u32 %s5, 4
      %s1142 = int_to_ptr.hbm [resolvable:$true] %s1141
      %1144 = dma.vmem_to_hbm [thread:$0]  %s1140, 32, %s1142, [#allocation3]
    $region25: #{simple_transformer_forward.1} parent=1 // pred_fallthru
      _
    // Predicated region
    $region26: #{simple_transformer_forward.1} parent=1 // pred_check
      _
    $region27: #{simple_transformer_forward.1} parent=1 // pred_check_branch
      %1146 = sbr.rel (0) target = $region29
    $region28: #{simple_transformer_forward.1} parent=1 // pred_region
      %1148 = dma.done [#allocation3], 32
    $region29: #{simple_transformer_forward.1} parent=1 // pred_fallthru
      _
    %1149 = vsyncpa [#allocation3], 1

</llo_original>
